<compile_context>
chip_gen: v7x
topology: tpu7x:2x2x1
jax: 0.10.0
libtpu: 0.0.40
codegen_flags: <defaults>
</compile_context>

<pallas_src>
import math
import jax
import jax.numpy as jnp
from jax.experimental import pallas as pl
from jax.experimental.pallas import tpu as pltpu

# ----------------------------- constants (small synthetic scale) -------------
IMG = 64                      # image resolution (stands in for 1024)
PATCH = 4                     # patch size of the stand-in image encoder
GRID = IMG // PATCH           # 16 -> low-res mask resolution (stands in for 256)
GRID_SHIFT = int(math.log2(GRID))
UP = IMG // GRID              # nearest-upsample factor (4)
P = GRID * GRID               # 256 tokens (lane axis)
D = 32                        # embedding dim
M = 4                         # number of mask tokens (multimask)
N_PTS = 3                     # prompt points per image
TGT = 32                      # classifier input size (stands in for 224)
HO = TGT // 2                 # stem-conv output spatial (stride 2)
CONV_C = 8                    # classifier stem conv channels
KPATCH = 3 * PATCH * PATCH    # 48 patch features
KCONV = 3 * 3 * 3             # 27 im2col features

assert (GRID & (GRID - 1)) == 0


# ----------------------------- Pallas kernels --------------------------------
def _decoder_kernel(patch_ref, wpatch_ref, pe_ref, tok_ref, wiou_ref, biou_ref,
                    logits_ref, iou_ref, bin_ref, bbox_ref):
    """Fused stand-in for image-encoder projection + sam_mask_decoder + iou head +
    argmax(iou) mask selection + low-res bbox.  Layout (features, pixels): lanes=P."""
    x = patch_ref[0]                                                    # (48, P) bf16
    # patch embedding (MXU, bf16 operands, f32 accumulate), pe/no-mem/no-mask add
    h = jnp.dot(wpatch_ref[...], x, preferred_element_type=jnp.float32)  # (D, P) f32
    h = h + pe_ref[...]

    # mask logits: tokens x features  -> (M, P), lane-dense output
    tok = tok_ref[0]                                                    # (M, D) bf16
    logits = jnp.dot(tok, h.astype(jnp.bfloat16),
                     preferred_element_type=jnp.float32)                # (M, P) f32
    logits_ref[0] = logits

    # IoU head: mean over pixels then a tiny projection (kept f32 on the VPU)
    pooled = jnp.mean(h, axis=1, keepdims=True)                         # (D, 1)
    iou = jnp.sum(pooled * wiou_ref[...], axis=0, keepdims=True) + biou_ref[...]  # (1, M)
    iou_ref[0] = iou

    # binary mask at argmax(iou)  (first index wins on ties)
    iou_max = jnp.max(iou, axis=1, keepdims=True)                       # (1, 1)
    m_iota = jax.lax.broadcasted_iota(jnp.int32, (1, M), 1)
    idx = jnp.min(jnp.where(iou == iou_max, m_iota, M), axis=1, keepdims=True)      # (1, 1)
    onehot = (jax.lax.broadcasted_iota(jnp.int32, (M, 1), 0) == idx).astype(jnp.float32)
    sel = jnp.sum(logits * onehot, axis=0, keepdims=True)               # (1, P)
    binm = (sel > 0.0).astype(jnp.float32)
    bin_ref[0] = binm

    # bbox of the low-res mask, computed without reshapes:
    # pixel p -> row = p >> GRID_SHIFT, col = p & (GRID-1)
    p_iota = jax.lax.broadcasted_iota(jnp.int32, (GRID, P), 1)
    g_iota = jax.lax.broadcasted_iota(jnp.int32, (GRID, P), 0)
    row_sel = ((p_iota >> GRID_SHIFT) == g_iota).astype(jnp.float32)    # (GRID, P)
    col_sel = ((p_iota & (GRID - 1)) == g_iota).astype(jnp.float32)
    row_any = jnp.max(binm * row_sel, axis=1, keepdims=True) > 0.0      # (GRID, 1)
    col_any = jnp.max(binm * col_sel, axis=1, keepdims=True) > 0.0      # (GRID, 1)
    g_col = jax.lax.broadcasted_iota(jnp.int32, (GRID, 1), 0)
    y_min = jnp.min(jnp.where(row_any, g_col, GRID), axis=0, keepdims=True)  # (1,1)
    y_max = jnp.max(jnp.where(row_any, g_col, -1), axis=0, keepdims=True)
    x_min = jnp.min(jnp.where(col_any, g_col, GRID), axis=0, keepdims=True)
    x_max = jnp.max(jnp.where(col_any, g_col, -1), axis=0, keepdims=True)
    idx4 = jax.lax.broadcasted_iota(jnp.int32, (1, 4), 1)
    bbox = (jnp.where(idx4 == 0, y_min, 0) + jnp.where(idx4 == 1, y_max, 0)
            + jnp.where(idx4 == 2, x_min, 0) + jnp.where(idx4 == 3, x_max, 0))
    bbox_ref[0] = bbox


def _classifier_kernel(cols_ref, wconv_ref, bconv_ref, wfc_ref, bfc_ref, out_ref):
    """Fused stand-in classifier: stem conv as im2col matmul + ReLU + GAP + fc."""
    feat = jnp.dot(wconv_ref[...], cols_ref[0],
                   preferred_element_type=jnp.float32)                  # (C, Ho*Ho)
    feat = jnp.maximum(feat + bconv_ref[...], 0.0)
    pooled = jnp.mean(feat, axis=1, keepdims=True)                      # (C, 1)
    out_ref[0] = jnp.sum(wfc_ref[...] * pooled, axis=0, keepdims=True) + bfc_ref[...]


# ----------------------------- parameters ------------------------------------
def init_params(key):
    ks = jax.random.split(key, 10)
    p = {}
    # weights stored so feature dims are on sublanes and pixels on lanes
    p["w_patch_T"] = 0.05 * jax.random.normal(ks[0], (D, KPATCH), jnp.float32)
    p["no_mem_embed"] = 0.02 * jax.random.normal(ks[1], (D, 1), jnp.float32)
    p["image_pe_T"] = 0.02 * jax.random.normal(ks[2], (D, P), jnp.float32)
    p["pe_gauss"] = jax.random.normal(ks[3], (2, D), jnp.float32)
    p["label_embed"] = 0.1 * jax.random.normal(ks[4], (4, D), jnp.float32)
    p["no_mask_embed"] = 0.02 * jax.random.normal(ks[5], (D, 1), jnp.float32)
    p["mask_tokens"] = 0.1 * jax.random.normal(ks[6], (M, D), jnp.float32)
    p["w_iou"] = 0.1 * jax.random.normal(ks[7], (D, M), jnp.float32)
    p["b_iou"] = jnp.zeros((1, M), jnp.float32)
    p["w_conv_T"] = 0.1 * jax.random.normal(ks[8], (CONV_C, KCONV), jnp.float32)
    p["b_conv_T"] = jnp.zeros((CONV_C, 1), jnp.float32)
    p["w_fc"] = 0.1 * jax.random.normal(ks[9], (CONV_C, 1), jnp.float32)
    p["b_fc"] = jnp.zeros((1, 1), jnp.float32)
    return p


# ----------------------------- plain-JAX glue ---------------------------------
def _resize_with_padding_jax(img, mask_low, bbox_low):
    # TODO(synk): data-dependent-size crop + bilinear resize stays in plain JAX
    # (dynamic gather has no clean Pallas TPU equivalent).
    # img (3,H,W); mask_low (GRID,GRID) binary; bbox_low (4,) int32 in low-res coords.
    T = TGT
    y_min_l, y_max_l, x_min_l, x_max_l = bbox_low[0], bbox_low[1], bbox_low[2], bbox_low[3]
    valid = y_max_l >= y_min_l
    # nearest-upsampled-mask bbox in full resolution (exact for integer factor UP)
    y_min = y_min_l * UP
    y_max = y_max_l * UP + (UP - 1)
    x_min = x_min_l * UP
    x_max = x_max_l * UP + (UP - 1)
    h = jnp.where(valid, y_max - y_min + 1, 1).astype(jnp.float32)
    w = jnp.where(valid, x_max - x_min + 1, 1).astype(jnp.float32)
    scale = jnp.minimum(T / h, T / w)
    new_h = jnp.minimum(jnp.ceil(h * scale), T).astype(jnp.int32)
    new_w = jnp.minimum(jnp.ceil(w * scale), T).astype(jnp.int32)
    y_off = jnp.maximum((T - new_h) // 2, 0)
    x_off = jnp.maximum((T - new_w) // 2, 0)
    ry = jnp.arange(T) - y_off
    rx = jnp.arange(T) - x_off
    in_y = (ry >= 0) & (ry < new_h)
    in_x = (rx >= 0) & (rx < new_w)
    # F.interpolate(bilinear, align_corners=False) source mapping
    sy = jnp.clip((ry.astype(jnp.float32) + 0.5) * (h / new_h.astype(jnp.float32)) - 0.5, 0.0, h - 1.0)
    sx = jnp.clip((rx.astype(jnp.float32) + 0.5) * (w / new_w.astype(jnp.float32)) - 0.5, 0.0, w - 1.0)
    ay = sy + y_min.astype(jnp.float32)
    ax = sx + x_min.astype(jnp.float32)
    y0 = jnp.floor(ay).astype(jnp.int32)
    x0 = jnp.floor(ax).astype(jnp.int32)
    y1 = jnp.minimum(y0 + 1, jnp.maximum(y_max, 0))
    x1 = jnp.minimum(x0 + 1, jnp.maximum(x_max, 0))
    wy = (ay - y0.astype(jnp.float32))[None, :, None]
    wx = (ax - x0.astype(jnp.float32))[None, None, :]

    def gather(yi, xi):
        # apply the (nearest-upsampled) mask at the tap: identical to bilinear
        # interpolation of the masked image, without materializing it.
        v = img[:, yi[:, None], xi[None, :]]                            # (3,T,T)
        mk = mask_low[(yi // UP)[:, None], (xi // UP)[None, :]]         # (T,T)
        return v * mk[None, :, :]

    v00 = gather(y0, x0)
    v01 = gather(y0, x1)
    v10 = gather(y1, x0)
    v11 = gather(y1, x1)
    out = (v00 * (1 - wy) * (1 - wx) + v01 * (1 - wy) * wx
           + v10 * wy * (1 - wx) + v11 * wy * wx)
    m2d = (in_y[:, None] & in_x[None, :])[None, :, :]
    return jnp.where(m2d & valid, out, 0.0)


# ----------------------------- forward ----------------------------------------
def pedestrain_sam2_forward(params, image, point_coords, point_labels):
    """
    image:        (B, 3, IMG, IMG) float32  (NCHW, already transformed)
    point_coords: (B, N, 2) float32
    point_labels: (B, N)    int32
    returns (prd_masks (B,M,GRID,GRID), person_logits (B,1), iou_predictions (B,M))
    """
    B, C, H, W = image.shape
    assert C == 3

    # ---- stand-in _image_encoder im2col (layout plumbing; lanes = P) ----
    # TODO(synk): real SAM2 Hiera backbone + FPN / high_res_feats not translated;
    # replaced by a patch-embedding projection done inside _decoder_kernel.
    pt = image.reshape(B, 3, GRID, PATCH, GRID, PATCH).transpose(0, 1, 3, 5, 2, 4)
    patches_T = pt.reshape(B, KPATCH, P).astype(jnp.bfloat16)           # (B,48,P)

    # combined image_pe + no_mem_embed + no_mask_embed (B-independent, (D,P) only —
    # the (B,P,D) dense_embeddings broadcast is never materialized in HBM)
    pe_total = params["image_pe_T"] + params["no_mem_embed"] + params["no_mask_embed"]

    # ---- _prep_prompts + stand-in sam_prompt_encoder (tiny; fused by XLA, no launch) ----
    orig_hw = jnp.array([W, H], jnp.float32)
    norm_coords = point_coords / orig_hw                                 # normalize_coords=True
    proj = jnp.einsum("bnc,cd->bnd", norm_coords, params["pe_gauss"])    # (B,N,D)
    lab = jax.nn.one_hot(point_labels, 4, dtype=jnp.float32) @ params["label_embed"]
    sparse = jnp.sin(2.0 * jnp.pi * proj) + lab                          # (B,N,D)
    tok = (params["mask_tokens"][None, :, :]
           + jnp.mean(sparse, axis=1, keepdims=True)).astype(jnp.bfloat16)  # (B,M,D)

    # ---- fused decoder / select / bbox kernel (grid over batch, parallel) ----
    dec_flops = B * (2 * D * KPATCH * P + 2 * M * D * P)
    dec_bytes = (B * KPATCH * P * 2 + D * KPATCH * 2 + D * P * 4 + B * M * D * 2
                 + D * M * 4 + M * 4 + B * M * P * 4 + B * M * 4 + B * P * 4 + B * 4 * 4)
    low_res_logits, iou_raw, bin_low, bbox_raw = pl.pallas_call(
        _decoder_kernel,
        grid=(B,),
        out_shape=(jax.ShapeDtypeStruct((B, M, P), jnp.float32),
                   jax.ShapeDtypeStruct((B, 1, M), jnp.float32),
                   jax.ShapeDtypeStruct((B, 1, P), jnp.float32),
                   jax.ShapeDtypeStruct((B, 1, 4), jnp.int32)),
        in_specs=[pl.BlockSpec((1, KPATCH, P), lambda b: (b, 0, 0)),
                  pl.BlockSpec((D, KPATCH), lambda b: (0, 0)),
                  pl.BlockSpec((D, P), lambda b: (0, 0)),
                  pl.BlockSpec((1, M, D), lambda b: (b, 0, 0)),
                  pl.BlockSpec((D, M), lambda b: (0, 0)),
                  pl.BlockSpec((1, M), lambda b: (0, 0))],
        out_specs=(pl.BlockSpec((1, M, P), lambda b: (b, 0, 0)),
                   pl.BlockSpec((1, 1, M), lambda b: (b, 0, 0)),
                   pl.BlockSpec((1, 1, P), lambda b: (b, 0, 0)),
                   pl.BlockSpec((1, 1, 4), lambda b: (b, 0, 0))),
        compiler_params=pltpu.CompilerParams(dimension_semantics=("parallel",)),
        cost_estimate=pl.CostEstimate(flops=int(dec_flops), transcendentals=0,
                                      bytes_accessed=int(dec_bytes)),
    )(patches_T, params["w_patch_T"].astype(jnp.bfloat16), pe_total, tok,
      params["w_iou"], params["b_iou"])

    prd_masks = low_res_logits.reshape(B, M, GRID, GRID)
    iou_predictions = iou_raw[:, 0, :]                                   # (B,M)
    mask_low = bin_low.reshape(B, GRID, GRID)                            # binary, low-res
    bbox_low = bbox_raw[:, 0, :]                                         # (B,4) low-res coords

    # ---- _extract_and_resize_images: crop + bilinear resize-with-padding.
    # mask applied at the gather taps (== image*nearest_upsampled_mask, un-materialized)
    extracted_images = jax.vmap(_resize_with_padding_jax)(image, mask_low, bbox_low)  # (B,3,TGT,TGT)

    # ---- classifier (ShuffleNetV2 stand-in: stem conv 3x3/s2 + GAP + fc, fused) ----
    # TODO(synk): ShuffleNetV2_x0_5 stage blocks (channel shuffle etc.) not translated.
    patches_cls = jax.lax.conv_general_dilated_patches(
        extracted_images, filter_shape=(3, 3), window_strides=(2, 2),
        padding=((1, 1), (1, 1)))                                        # (B,27,HO,HO)
    cols_T = patches_cls.reshape(B, KCONV, HO * HO).astype(jnp.bfloat16)

    cls_flops = B * (2 * CONV_C * KCONV * HO * HO)
    cls_bytes = B * KCONV * HO * HO * 2 + CONV_C * KCONV * 2 + CONV_C * 4 * 2 + B * 4
    person_logits = pl.pallas_call(
        _classifier_kernel,
        grid=(B,),
        out_shape=jax.ShapeDtypeStruct((B, 1, 1), jnp.float32),
        in_specs=[pl.BlockSpec((1, KCONV, HO * HO), lambda b: (b, 0, 0)),
                  pl.BlockSpec((CONV_C, KCONV), lambda b: (0, 0)),
                  pl.BlockSpec((CONV_C, 1), lambda b: (0, 0)),
                  pl.BlockSpec((CONV_C, 1), lambda b: (0, 0)),
                  pl.BlockSpec((1, 1), lambda b: (0, 0))],
        out_specs=pl.BlockSpec((1, 1, 1), lambda b: (b, 0, 0)),
        compiler_params=pltpu.CompilerParams(dimension_semantics=("parallel",)),
        cost_estimate=pl.CostEstimate(flops=int(cls_flops), transcendentals=0,
                                      bytes_accessed=int(cls_bytes)),
    )(cols_T, params["w_conv_T"].astype(jnp.bfloat16), params["b_conv_T"],
      params["w_fc"], params["b_fc"])
    person_logits = person_logits.reshape(B, 1)

    # training path: return all multimask logits (module's eval-only postprocess skipped)
    return prd_masks, person_logits, iou_predictions


# ----------------------------- main -------------------------------------------
if __name__ == "__main__":
    key = jax.random.PRNGKey(0)
    k_img, k_pts, k_par = jax.random.split(key, 3)

    B = 2
    image = jax.random.normal(k_img, (B, 3, IMG, IMG), jnp.float32)
    point_coords = jax.random.uniform(k_pts, (B, N_PTS, 2), jnp.float32, 0.0, float(IMG))
    point_labels = jnp.ones((B, N_PTS), jnp.int32)

    params = init_params(k_par)

    fwd = jax.jit(pedestrain_sam2_forward)
    prd_masks, person_logits, iou_predictions = fwd(params, image, point_coords, point_labels)
    jax.block_until_ready((prd_masks, person_logits, iou_predictions))

    assert prd_masks.shape == (B, M, GRID, GRID)
    assert person_logits.shape == (B, 1)
    assert iou_predictions.shape == (B, M)
    print("KERNEL_OK")
</pallas_src>

<mosaic_0001>
module attributes {stable_mosaic.version = 11 : i64} {
  func.func private @main(%arg0: i32) attributes {dimension_semantics = [#tpu.dimension_semantics<core_parallel>], iteration_bounds = array<i64: 2>, tpu.core_type = #tpu.core_type<sc_scalar_subcore>, window_params = []} {
    return
  }
}

module attributes {stable_mosaic.version = 11 : i64} {
  func.func private @main(%arg0: i32) attributes {dimension_semantics = [#tpu.dimension_semantics<core_parallel>], iteration_bounds = array<i64: 2>, tpu.core_type = #tpu.core_type<sc_scalar_subcore>, window_params = []} {
    return
  }
}

module attributes {stable_mosaic.version = 11 : i64} {
  func.func @_decoder_kernel(%arg0: i32, %arg1: memref<1x48x256xbf16, #tpu.memory_space<vmem>>, %arg2: memref<32x48xbf16, #tpu.memory_space<vmem>>, %arg3: memref<32x256xf32, #tpu.memory_space<vmem>>, %arg4: memref<1x4x32xbf16, #tpu.memory_space<vmem>>, %arg5: memref<32x4xf32, #tpu.memory_space<vmem>>, %arg6: memref<1x4xf32, #tpu.memory_space<vmem>>, %arg7: memref<1x4x256xf32, #tpu.memory_space<vmem>>, %arg8: memref<1x1x4xf32, #tpu.memory_space<vmem>>, %arg9: memref<1x1x256xf32, #tpu.memory_space<vmem>>, %arg10: memref<1x1x4xi32, #tpu.memory_space<vmem>>) attributes {dimension_semantics = [#tpu.dimension_semantics<parallel>], iteration_bounds = array<i64: 2>, scalar_prefetch = 0 : i64, scratch_operands = 0 : i64, tpu.core_type = #tpu.core_type<tc>, window_params = [{transform_indices = @transform_0, window_bounds = array<i64: 1, 48, 256>}, {pipeline_mode = #tpu.pipeline_mode<synchronous>, transform_indices = @transform_1, window_bounds = array<i64: 32, 48>}, {pipeline_mode = #tpu.pipeline_mode<synchronous>, transform_indices = @transform_2, window_bounds = array<i64: 32, 256>}, {transform_indices = @transform_3, window_bounds = array<i64: 1, 4, 32>}, {pipeline_mode = #tpu.pipeline_mode<synchronous>, transform_indices = @transform_4, window_bounds = array<i64: 32, 4>}, {pipeline_mode = #tpu.pipeline_mode<synchronous>, transform_indices = @transform_5, window_bounds = array<i64: 1, 4>}, {transform_indices = @transform_6, window_bounds = array<i64: 1, 4, 256>}, {transform_indices = @transform_7, window_bounds = array<i64: 1, 1, 4>}, {transform_indices = @transform_8, window_bounds = array<i64: 1, 1, 256>}, {transform_indices = @transform_9, window_bounds = array<i64: 1, 1, 4>}]} {
    %c0 = arith.constant 0 : index
    %c0_0 = arith.constant 0 : index
    %c0_1 = arith.constant 0 : index
    %0 = vector.load %arg1[%c0, %c0_0, %c0_1] : memref<1x48x256xbf16, #tpu.memory_space<vmem>>, vector<1x48x256xbf16>
    %1 = vector.shape_cast %0 : vector<1x48x256xbf16> to vector<48x256xbf16>
    %c0_2 = arith.constant 0 : index
    %c0_3 = arith.constant 0 : index
    %2 = vector.load %arg2[%c0_2, %c0_3] : memref<32x48xbf16, #tpu.memory_space<vmem>>, vector<32x48xbf16>
    %cst = arith.constant dense<0.000000e+00> : vector<32x256xf32>
    %3 = tpu.matmul %2, %1, %cst {dimension_numbers = #tpu.dot_dimension_numbers<[1], [0], [0], [1], [0, 0, 1, 1], [], []>} : vector<32x48xbf16>, vector<48x256xbf16>, vector<32x256xf32> -> vector<32x256xf32>
    %c0_4 = arith.constant 0 : index
    %c0_5 = arith.constant 0 : index
    %4 = vector.load %arg3[%c0_4, %c0_5] : memref<32x256xf32, #tpu.memory_space<vmem>>, vector<32x256xf32>
    %5 = arith.addf %3, %4 : vector<32x256xf32>
    %c0_6 = arith.constant 0 : index
    %c0_7 = arith.constant 0 : index
    %c0_8 = arith.constant 0 : index
    %6 = vector.load %arg4[%c0_6, %c0_7, %c0_8] : memref<1x4x32xbf16, #tpu.memory_space<vmem>>, vector<1x4x32xbf16>
    %7 = vector.shape_cast %6 : vector<1x4x32xbf16> to vector<4x32xbf16>
    %8 = arith.truncf %5 : vector<32x256xf32> to vector<32x256xbf16>
    %cst_9 = arith.constant dense<0.000000e+00> : vector<4x256xf32>
    %9 = tpu.matmul %7, %8, %cst_9 {dimension_numbers = #tpu.dot_dimension_numbers<[1], [0], [0], [1], [0, 0, 1, 1], [], []>} : vector<4x32xbf16>, vector<32x256xbf16>, vector<4x256xf32> -> vector<4x256xf32>
    %c0_10 = arith.constant 0 : index
    %c0_11 = arith.constant 0 : index
    %c0_12 = arith.constant 0 : index
    %10 = vector.load %arg7[%c0_10, %c0_11, %c0_12] : memref<1x4x256xf32, #tpu.memory_space<vmem>>, vector<1x4x256xf32>
    %11 = vector.shape_cast %10 : vector<1x4x256xf32> to vector<4x256xf32>
    %12 = vector.shape_cast %9 : vector<4x256xf32> to vector<1x4x256xf32>
    tpu.vector_store %arg7[%c0_10, %c0_11, %c0_12], %12 {strides = array<i32>} : memref<1x4x256xf32, #tpu.memory_space<vmem>>, vector<1x4x256xf32>,
    %cst_13 = arith.constant dense<0.000000e+00> : vector<32xf32>
    %13 = vector.multi_reduction <add>, %5, %cst_13 [1] : vector<32x256xf32> to vector<32xf32>
    %14 = vector.shape_cast %13 : vector<32xf32> to vector<32x1xf32>
    %cst_14 = arith.constant 2.560000e+02 : f32
    %15 = vector.broadcast %cst_14 : f32 to vector<32x1xf32>
    %16 = arith.divf %14, %15 : vector<32x1xf32>
    %c0_15 = arith.constant 0 : index
    %c0_16 = arith.constant 0 : index
    %17 = vector.load %arg5[%c0_15, %c0_16] : memref<32x4xf32, #tpu.memory_space<vmem>>, vector<32x4xf32>
    %18 = vector.broadcast %16 : vector<32x1xf32> to vector<32x4xf32>
    %19 = arith.mulf %18, %17 : vector<32x4xf32>
    %cst_17 = arith.constant dense<0.000000e+00> : vector<4xf32>
    %20 = vector.multi_reduction <add>, %19, %cst_17 [0] : vector<32x4xf32> to vector<4xf32>
    %21 = vector.shape_cast %20 : vector<4xf32> to vector<1x4xf32>
    %c0_18 = arith.constant 0 : index
    %c0_19 = arith.constant 0 : index
    %22 = vector.load %arg6[%c0_18, %c0_19] : memref<1x4xf32, #tpu.memory_space<vmem>>, vector<1x4xf32>
    %23 = arith.addf %21, %22 : vector<1x4xf32>
    %c0_20 = arith.constant 0 : index
    %c0_21 = arith.constant 0 : index
    %c0_22 = arith.constant 0 : index
    %24 = vector.load %arg8[%c0_20, %c0_21, %c0_22] : memref<1x1x4xf32, #tpu.memory_space<vmem>>, vector<1x1x4xf32>
    %25 = vector.shape_cast %24 : vector<1x1x4xf32> to vector<1x4xf32>
    %26 = vector.shape_cast %23 : vector<1x4xf32> to vector<1x1x4xf32>
    tpu.vector_store %arg8[%c0_20, %c0_21, %c0_22], %26 {strides = array<i32>} : memref<1x1x4xf32, #tpu.memory_space<vmem>>, vector<1x1x4xf32>,
    %cst_23 = arith.constant dense<0xFF800000> : vector<1xf32>
    %27 = vector.multi_reduction <maximumf>, %23, %cst_23 [1] : vector<1x4xf32> to vector<1xf32>
    %28 = vector.shape_cast %27 : vector<1xf32> to vector<1x1xf32>
    %29 = tpu.iota {dimensions = array<i32: 1>} : vector<1x4xi32>
    %30 = vector.broadcast %28 : vector<1x1xf32> to vector<1x4xf32>
    %31 = arith.cmpf oeq, %23, %30 : vector<1x4xf32>
    %c4_i32 = arith.constant 4 : i32
    %32 = vector.broadcast %c4_i32 : i32 to vector<1x4xi32>
    %33 = arith.select %31, %29, %32 : vector<1x4xi1>, vector<1x4xi32>
    %cst_24 = arith.constant dense<2147483647> : vector<1xi32>
    %34 = vector.multi_reduction <minsi>, %33, %cst_24 [1] : vector<1x4xi32> to vector<1xi32>
    %35 = vector.shape_cast %34 : vector<1xi32> to vector<1x1xi32>
    %36 = tpu.iota {dimensions = array<i32: 0>} : vector<4x1xi32>
    %37 = vector.broadcast %35 : vector<1x1xi32> to vector<4x1xi32>
    %38 = arith.cmpi eq, %36, %37 : vector<4x1xi32>
    %39 = arith.extui %38 : vector<4x1xi1> to vector<4x1xi32>
    %40 = arith.sitofp %39 : vector<4x1xi32> to vector<4x1xf32>
    %41 = vector.broadcast %40 : vector<4x1xf32> to vector<4x256xf32>
    %42 = arith.mulf %9, %41 : vector<4x256xf32>
    %cst_25 = arith.constant dense<0.000000e+00> : vector<256xf32>
    %43 = vector.multi_reduction <add>, %42, %cst_25 [0] : vector<4x256xf32> to vector<256xf32>
    %44 = vector.shape_cast %43 : vector<256xf32> to vector<1x256xf32>
    %cst_26 = arith.constant 0.000000e+00 : f32
    %45 = vector.broadcast %cst_26 : f32 to vector<1x256xf32>
    %46 = arith.cmpf ogt, %44, %45 : vector<1x256xf32>
    %47 = arith.extui %46 : vector<1x256xi1> to vector<1x256xi32>
    %48 = arith.sitofp %47 : vector<1x256xi32> to vector<1x256xf32>
    %c0_27 = arith.constant 0 : index
    %c0_28 = arith.constant 0 : index
    %c0_29 = arith.constant 0 : index
    %49 = vector.load %arg9[%c0_27, %c0_28, %c0_29] : memref<1x1x256xf32, #tpu.memory_space<vmem>>, vector<1x1x256xf32>
    %50 = vector.shape_cast %49 : vector<1x1x256xf32> to vector<1x256xf32>
    %51 = vector.shape_cast %48 : vector<1x256xf32> to vector<1x1x256xf32>
    tpu.vector_store %arg9[%c0_27, %c0_28, %c0_29], %51 {strides = array<i32>} : memref<1x1x256xf32, #tpu.memory_space<vmem>>, vector<1x1x256xf32>,
    %52 = tpu.iota {dimensions = array<i32: 1>} : vector<16x256xi32>
    %53 = tpu.iota {dimensions = array<i32: 0>} : vector<16x256xi32>
    %c4_i32_30 = arith.constant 4 : i32
    %54 = vector.broadcast %c4_i32_30 : i32 to vector<16x256xi32>
    %55 = arith.shrsi %52, %54 : vector<16x256xi32>
    %56 = arith.cmpi eq, %55, %53 : vector<16x256xi32>
    %57 = arith.extui %56 : vector<16x256xi1> to vector<16x256xi32>
    %58 = arith.sitofp %57 : vector<16x256xi32> to vector<16x256xf32>
    %c15_i32 = arith.constant 15 : i32
    %59 = vector.broadcast %c15_i32 : i32 to vector<16x256xi32>
    %60 = arith.andi %52, %59 : vector<16x256xi32>
    %61 = arith.cmpi eq, %60, %53 : vector<16x256xi32>
    %62 = arith.extui %61 : vector<16x256xi1> to vector<16x256xi32>
    %63 = arith.sitofp %62 : vector<16x256xi32> to vector<16x256xf32>
    %64 = vector.broadcast %48 : vector<1x256xf32> to vector<16x256xf32>
    %65 = arith.mulf %64, %58 : vector<16x256xf32>
    %cst_31 = arith.constant dense<0xFF800000> : vector<16xf32>
    %66 = vector.multi_reduction <maximumf>, %65, %cst_31 [1] : vector<16x256xf32> to vector<16xf32>
    %67 = vector.shape_cast %66 : vector<16xf32> to vector<16x1xf32>
    %cst_32 = arith.constant 0.000000e+00 : f32
    %68 = vector.broadcast %cst_32 : f32 to vector<16x1xf32>
    %69 = arith.cmpf ogt, %67, %68 : vector<16x1xf32>
    %70 = vector.broadcast %48 : vector<1x256xf32> to vector<16x256xf32>
    %71 = arith.mulf %70, %63 : vector<16x256xf32>
    %cst_33 = arith.constant dense<0xFF800000> : vector<16xf32>
    %72 = vector.multi_reduction <maximumf>, %71, %cst_33 [1] : vector<16x256xf32> to vector<16xf32>
    %73 = vector.shape_cast %72 : vector<16xf32> to vector<16x1xf32>
    %cst_34 = arith.constant 0.000000e+00 : f32
    %74 = vector.broadcast %cst_34 : f32 to vector<16x1xf32>
    %75 = arith.cmpf ogt, %73, %74 : vector<16x1xf32>
    %76 = tpu.iota {dimensions = array<i32: 0>} : vector<16x1xi32>
    %c16_i32 = arith.constant 16 : i32
    %77 = vector.broadcast %c16_i32 : i32 to vector<16x1xi32>
    %78 = arith.select %69, %76, %77 : vector<16x1xi1>, vector<16x1xi32>
    %cst_35 = arith.constant dense<2147483647> : vector<1xi32>
    %79 = vector.multi_reduction <minsi>, %78, %cst_35 [0] : vector<16x1xi32> to vector<1xi32>
    %80 = vector.shape_cast %79 : vector<1xi32> to vector<1x1xi32>
    %c-1_i32 = arith.constant -1 : i32
    %81 = vector.broadcast %c-1_i32 : i32 to vector<16x1xi32>
    %82 = arith.select %69, %76, %81 : vector<16x1xi1>, vector<16x1xi32>
    %cst_36 = arith.constant dense<-2147483648> : vector<1xi32>
    %83 = vector.multi_reduction <maxsi>, %82, %cst_36 [0] : vector<16x1xi32> to vector<1xi32>
    %84 = vector.shape_cast %83 : vector<1xi32> to vector<1x1xi32>
    %c16_i32_37 = arith.constant 16 : i32
    %85 = vector.broadcast %c16_i32_37 : i32 to vector<16x1xi32>
    %86 = arith.select %75, %76, %85 : vector<16x1xi1>, vector<16x1xi32>
    %cst_38 = arith.constant dense<2147483647> : vector<1xi32>
    %87 = vector.multi_reduction <minsi>, %86, %cst_38 [0] : vector<16x1xi32> to vector<1xi32>
    %88 = vector.shape_cast %87 : vector<1xi32> to vector<1x1xi32>
    %c-1_i32_39 = arith.constant -1 : i32
    %89 = vector.broadcast %c-1_i32_39 : i32 to vector<16x1xi32>
    %90 = arith.select %75, %76, %89 : vector<16x1xi1>, vector<16x1xi32>
    %cst_40 = arith.constant dense<-2147483648> : vector<1xi32>
    %91 = vector.multi_reduction <maxsi>, %90, %cst_40 [0] : vector<16x1xi32> to vector<1xi32>
    %92 = vector.shape_cast %91 : vector<1xi32> to vector<1x1xi32>
    %93 = tpu.iota {dimensions = array<i32: 1>} : vector<1x4xi32>
    %c0_i32 = arith.constant 0 : i32
    %94 = vector.broadcast %c0_i32 : i32 to vector<1x4xi32>
    %95 = arith.cmpi eq, %93, %94 : vector<1x4xi32>
    %c0_i32_41 = arith.constant 0 : i32
    %96 = vector.shape_cast %80 : vector<1x1xi32> to vector<1x1xi32>
    %97 = vector.broadcast %96 : vector<1x1xi32> to vector<1x4xi32>
    %98 = vector.broadcast %c0_i32_41 : i32 to vector<1x4xi32>
    %99 = arith.select %95, %97, %98 : vector<1x4xi1>, vector<1x4xi32>
    %c1_i32 = arith.constant 1 : i32
    %100 = vector.broadcast %c1_i32 : i32 to vector<1x4xi32>
    %101 = arith.cmpi eq, %93, %100 : vector<1x4xi32>
    %c0_i32_42 = arith.constant 0 : i32
    %102 = vector.shape_cast %84 : vector<1x1xi32> to vector<1x1xi32>
    %103 = vector.broadcast %102 : vector<1x1xi32> to vector<1x4xi32>
    %104 = vector.broadcast %c0_i32_42 : i32 to vector<1x4xi32>
    %105 = arith.select %101, %103, %104 : vector<1x4xi1>, vector<1x4xi32>
    %106 = arith.addi %99, %105 : vector<1x4xi32>
    %c2_i32 = arith.constant 2 : i32
    %107 = vector.broadcast %c2_i32 : i32 to vector<1x4xi32>
    %108 = arith.cmpi eq, %93, %107 : vector<1x4xi32>
    %c0_i32_43 = arith.constant 0 : i32
    %109 = vector.shape_cast %88 : vector<1x1xi32> to vector<1x1xi32>
    %110 = vector.broadcast %109 : vector<1x1xi32> to vector<1x4xi32>
    %111 = vector.broadcast %c0_i32_43 : i32 to vector<1x4xi32>
    %112 = arith.select %108, %110, %111 : vector<1x4xi1>, vector<1x4xi32>
    %113 = arith.addi %106, %112 : vector<1x4xi32>
    %c3_i32 = arith.constant 3 : i32
    %114 = vector.broadcast %c3_i32 : i32 to vector<1x4xi32>
    %115 = arith.cmpi eq, %93, %114 : vector<1x4xi32>
    %c0_i32_44 = arith.constant 0 : i32
    %116 = vector.shape_cast %92 : vector<1x1xi32> to vector<1x1xi32>
    %117 = vector.broadcast %116 : vector<1x1xi32> to vector<1x4xi32>
    %118 = vector.broadcast %c0_i32_44 : i32 to vector<1x4xi32>
    %119 = arith.select %115, %117, %118 : vector<1x4xi1>, vector<1x4xi32>
    %120 = arith.addi %113, %119 : vector<1x4xi32>
    %c0_45 = arith.constant 0 : index
    %c0_46 = arith.constant 0 : index
    %c0_47 = arith.constant 0 : index
    %121 = vector.load %arg10[%c0_45, %c0_46, %c0_47] : memref<1x1x4xi32, #tpu.memory_space<vmem>>, vector<1x1x4xi32>
    %122 = vector.shape_cast %121 : vector<1x1x4xi32> to vector<1x4xi32>
    %123 = vector.shape_cast %120 : vector<1x4xi32> to vector<1x1x4xi32>
    tpu.vector_store %arg10[%c0_45, %c0_46, %c0_47], %123 {strides = array<i32>} : memref<1x1x4xi32, #tpu.memory_space<vmem>>, vector<1x1x4xi32>,
    return
  }
  func.func @transform_0(%arg0: i32) -> (i32, i32, i32) {
    %c0_i32 = arith.constant 0 : i32
    %c0_i32_0 = arith.constant 0 : i32
    %c0_i32_1 = arith.constant 0 : i32
    return %arg0, %c0_i32, %c0_i32_0 : i32, i32, i32
  }
  func.func @transform_1(%arg0: i32) -> (i32, i32) {
    %c0_i32 = arith.constant 0 : i32
    %c0_i32_0 = arith.constant 0 : i32
    %c0_i32_1 = arith.constant 0 : i32
    return %c0_i32, %c0_i32_0 : i32, i32
  }
  func.func @transform_2(%arg0: i32) -> (i32, i32) {
    %c0_i32 = arith.constant 0 : i32
    %c0_i32_0 = arith.constant 0 : i32
    %c0_i32_1 = arith.constant 0 : i32
    return %c0_i32, %c0_i32_0 : i32, i32
  }
  func.func @transform_3(%arg0: i32) -> (i32, i32, i32) {
    %c0_i32 = arith.constant 0 : i32
    %c0_i32_0 = arith.constant 0 : i32
    %c0_i32_1 = arith.constant 0 : i32
    return %arg0, %c0_i32, %c0_i32_0 : i32, i32, i32
  }
  func.func @transform_4(%arg0: i32) -> (i32, i32) {
    %c0_i32 = arith.constant 0 : i32
    %c0_i32_0 = arith.constant 0 : i32
    %c0_i32_1 = arith.constant 0 : i32
    return %c0_i32, %c0_i32_0 : i32, i32
  }
  func.func @transform_5(%arg0: i32) -> (i32, i32) {
    %c0_i32 = arith.constant 0 : i32
    %c0_i32_0 = arith.constant 0 : i32
    %c0_i32_1 = arith.constant 0 : i32
    return %c0_i32, %c0_i32_0 : i32, i32
  }
  func.func @transform_6(%arg0: i32) -> (i32, i32, i32) {
    %c0_i32 = arith.constant 0 : i32
    %c0_i32_0 = arith.constant 0 : i32
    %c0_i32_1 = arith.constant 0 : i32
    return %arg0, %c0_i32, %c0_i32_0 : i32, i32, i32
  }
  func.func @transform_7(%arg0: i32) -> (i32, i32, i32) {
    %c0_i32 = arith.constant 0 : i32
    %c0_i32_0 = arith.constant 0 : i32
    %c0_i32_1 = arith.constant 0 : i32
    return %arg0, %c0_i32, %c0_i32_0 : i32, i32, i32
  }
  func.func @transform_8(%arg0: i32) -> (i32, i32, i32) {
    %c0_i32 = arith.constant 0 : i32
    %c0_i32_0 = arith.constant 0 : i32
    %c0_i32_1 = arith.constant 0 : i32
    return %arg0, %c0_i32, %c0_i32_0 : i32, i32, i32
  }
  func.func @transform_9(%arg0: i32) -> (i32, i32, i32) {
    %c0_i32 = arith.constant 0 : i32
    %c0_i32_0 = arith.constant 0 : i32
    %c0_i32_1 = arith.constant 0 : i32
    return %arg0, %c0_i32, %c0_i32_0 : i32, i32, i32
  }
}

module attributes {stable_mosaic.version = 11 : i64} {
  func.func @_classifier_kernel(%arg0: i32, %arg1: memref<1x27x256xbf16, #tpu.memory_space<vmem>>, %arg2: memref<8x27xbf16, #tpu.memory_space<vmem>>, %arg3: memref<8x1xf32, #tpu.memory_space<vmem>>, %arg4: memref<8x1xf32, #tpu.memory_space<vmem>>, %arg5: memref<1x1xf32, #tpu.memory_space<vmem>>, %arg6: memref<1x1x1xf32, #tpu.memory_space<vmem>>) attributes {dimension_semantics = [#tpu.dimension_semantics<parallel>], iteration_bounds = array<i64: 2>, scalar_prefetch = 0 : i64, scratch_operands = 0 : i64, tpu.core_type = #tpu.core_type<tc>, window_params = [{transform_indices = @transform_0, window_bounds = array<i64: 1, 27, 256>}, {pipeline_mode = #tpu.pipeline_mode<synchronous>, transform_indices = @transform_1, window_bounds = array<i64: 8, 27>}, {pipeline_mode = #tpu.pipeline_mode<synchronous>, transform_indices = @transform_2, window_bounds = array<i64: 8, 1>}, {pipeline_mode = #tpu.pipeline_mode<synchronous>, transform_indices = @transform_3, window_bounds = array<i64: 8, 1>}, {pipeline_mode = #tpu.pipeline_mode<synchronous>, transform_indices = @transform_4, window_bounds = array<i64: 1, 1>}, {transform_indices = @transform_5, window_bounds = array<i64: 1, 1, 1>}]} {
    %c0 = arith.constant 0 : index
    %c0_0 = arith.constant 0 : index
    %0 = vector.load %arg2[%c0, %c0_0] : memref<8x27xbf16, #tpu.memory_space<vmem>>, vector<8x27xbf16>
    %c0_1 = arith.constant 0 : index
    %c0_2 = arith.constant 0 : index
    %c0_3 = arith.constant 0 : index
    %1 = vector.load %arg1[%c0_1, %c0_2, %c0_3] : memref<1x27x256xbf16, #tpu.memory_space<vmem>>, vector<1x27x256xbf16>
    %2 = vector.shape_cast %1 : vector<1x27x256xbf16> to vector<27x256xbf16>
    %cst = arith.constant dense<0.000000e+00> : vector<8x256xf32>
    %3 = tpu.matmul %0, %2, %cst {dimension_numbers = #tpu.dot_dimension_numbers<[1], [0], [0], [1], [0, 0, 1, 1], [], []>} : vector<8x27xbf16>, vector<27x256xbf16>, vector<8x256xf32> -> vector<8x256xf32>
    %c0_4 = arith.constant 0 : index
    %c0_5 = arith.constant 0 : index
    %4 = vector.load %arg3[%c0_4, %c0_5] : memref<8x1xf32, #tpu.memory_space<vmem>>, vector<8x1xf32>
    %5 = vector.broadcast %4 : vector<8x1xf32> to vector<8x256xf32>
    %6 = arith.addf %3, %5 : vector<8x256xf32>
    %cst_6 = arith.constant 0.000000e+00 : f32
    %7 = vector.broadcast %cst_6 : f32 to vector<8x256xf32>
    %8 = arith.maximumf %6, %7 : vector<8x256xf32>
    %cst_7 = arith.constant dense<0.000000e+00> : vector<8xf32>
    %9 = vector.multi_reduction <add>, %8, %cst_7 [1] : vector<8x256xf32> to vector<8xf32>
    %10 = vector.shape_cast %9 : vector<8xf32> to vector<8x1xf32>
    %cst_8 = arith.constant 2.560000e+02 : f32
    %11 = vector.broadcast %cst_8 : f32 to vector<8x1xf32>
    %12 = arith.divf %10, %11 : vector<8x1xf32>
    %c0_9 = arith.constant 0 : index
    %c0_10 = arith.constant 0 : index
    %13 = vector.load %arg4[%c0_9, %c0_10] : memref<8x1xf32, #tpu.memory_space<vmem>>, vector<8x1xf32>
    %14 = arith.mulf %13, %12 : vector<8x1xf32>
    %cst_11 = arith.constant dense<0.000000e+00> : vector<1xf32>
    %15 = vector.multi_reduction <add>, %14, %cst_11 [0] : vector<8x1xf32> to vector<1xf32>
    %16 = vector.shape_cast %15 : vector<1xf32> to vector<1x1xf32>
    %c0_12 = arith.constant 0 : index
    %c0_13 = arith.constant 0 : index
    %17 = vector.load %arg5[%c0_12, %c0_13] : memref<1x1xf32, #tpu.memory_space<vmem>>, vector<1x1xf32>
    %18 = arith.addf %16, %17 : vector<1x1xf32>
    %c0_14 = arith.constant 0 : index
    %c0_15 = arith.constant 0 : index
    %c0_16 = arith.constant 0 : index
    %19 = vector.load %arg6[%c0_14, %c0_15, %c0_16] : memref<1x1x1xf32, #tpu.memory_space<vmem>>, vector<1x1x1xf32>
    %20 = vector.shape_cast %19 : vector<1x1x1xf32> to vector<1x1xf32>
    %21 = vector.shape_cast %18 : vector<1x1xf32> to vector<1x1x1xf32>
    tpu.vector_store %arg6[%c0_14, %c0_15, %c0_16], %21 {strides = array<i32>} : memref<1x1x1xf32, #tpu.memory_space<vmem>>, vector<1x1x1xf32>,
    return
  }
  func.func @transform_0(%arg0: i32) -> (i32, i32, i32) {
    %c0_i32 = arith.constant 0 : i32
    %c0_i32_0 = arith.constant 0 : i32
    %c0_i32_1 = arith.constant 0 : i32
    return %arg0, %c0_i32, %c0_i32_0 : i32, i32, i32
  }
  func.func @transform_1(%arg0: i32) -> (i32, i32) {
    %c0_i32 = arith.constant 0 : i32
    %c0_i32_0 = arith.constant 0 : i32
    %c0_i32_1 = arith.constant 0 : i32
    return %c0_i32, %c0_i32_0 : i32, i32
  }
  func.func @transform_2(%arg0: i32) -> (i32, i32) {
    %c0_i32 = arith.constant 0 : i32
    %c0_i32_0 = arith.constant 0 : i32
    %c0_i32_1 = arith.constant 0 : i32
    return %c0_i32, %c0_i32_0 : i32, i32
  }
  func.func @transform_3(%arg0: i32) -> (i32, i32) {
    %c0_i32 = arith.constant 0 : i32
    %c0_i32_0 = arith.constant 0 : i32
    %c0_i32_1 = arith.constant 0 : i32
    return %c0_i32, %c0_i32_0 : i32, i32
  }
  func.func @transform_4(%arg0: i32) -> (i32, i32) {
    %c0_i32 = arith.constant 0 : i32
    %c0_i32_0 = arith.constant 0 : i32
    %c0_i32_1 = arith.constant 0 : i32
    return %c0_i32, %c0_i32_0 : i32, i32
  }
  func.func @transform_5(%arg0: i32) -> (i32, i32, i32) {
    %c0_i32 = arith.constant 0 : i32
    %c0_i32_0 = arith.constant 0 : i32
    %c0_i32_1 = arith.constant 0 : i32
    return %arg0, %c0_i32, %c0_i32_0 : i32, i32, i32
  }
}

</mosaic_0001>

<llo_original>
// kernel: pedestrain_sam2_forward.2
$region0: #{pedestrain_sam2_forward.2}
  #allocation0 [shape = 'u32[]', space=smem, size = 0x4, offset = 0x4, fixed_abs, tag = 'smem constant byte address 0x4 - core index']
  #allocation1 [shape = 'u32[144,128]{1,0:T(1,128)}', space=vmem, size = 0x12000, scoped, tag = 'internal scratch']
  %s0 = inlined_call_operand.vmem [shape: bf16[2,48,256], index: 0, kind: input, shape index: {}]
  %s1 = inlined_call_operand.vmem [shape: bf16[32,48], index: 1, kind: input, shape index: {}]
  %s2 = inlined_call_operand.vmem [shape: f32[32,256], index: 2, kind: input, shape index: {}]
  %s3 = inlined_call_operand.vmem [shape: bf16[2,4,32], index: 3, kind: input, shape index: {}]
  %s4 = inlined_call_operand.vmem [shape: f32[32,4], index: 4, kind: input, shape index: {}]
  %s5 = inlined_call_operand.vmem [shape: f32[1,4], index: 5, kind: input, shape index: {}]
  %s6 = inlined_call_operand.vmem [shape: f32[2,4,256], index: 6, kind: output, shape index: {0}]
  %s7 = inlined_call_operand.hbm [shape: f32[2,1,4], index: 7, kind: output, shape index: {1}]
  %s8 = inlined_call_operand.vmem [shape: f32[2,1,256], index: 8, kind: output, shape index: {2}]
  %s9 = inlined_call_operand.vmem [shape: s32[2,1,4], index: 9, kind: output, shape index: {3}]
  %10 = xla_tuple %s6, %s7, %s8, %s9
  %s11 = sld [smem:[#allocation0]]
  $region81: #{pedestrain_sam2_forward.2} parent=0
    _
  %s13 = ssub.s32 1, %s11
  %s14 = scalar_select 0, %s13, %s11
  $region1: #{pedestrain_sam2_forward.2} parent=0
    #allocation2 [shape = 'u8[1024]{0}', space=vmem, size = 0x400, scoped, tag = 'output window, operand 1']
    #allocation3 [shape = 's32[2]{0}', space=sflag, size = 0x8, scoped, tag = 'scoped memory for pedestrain_sam2_forward.2']
    %15 = vsyncpa [#allocation3], 0
    %s16 = scalar_lea.sflag [#allocation3], 1
    %17 = vsyncpa %s16, 0
    loop: start=0, step=1, limit=4
    $region2: #{pedestrain_sam2_forward.2} parent=1 // loop_pre_header
      _
    $region3: #{pedestrain_sam2_forward.2} parent=1 // loop_header
      %s19 = sphi 0, %s23
      %p20 = scmp.ge.s32.totalorder %s19, 4
      %s29 = sphi 0, %s31
      %s32 = sphi 0, %s29
      %s33 = sphi 0, %s32
      %s49 = sphi 0, %s33
      %s53 = sphi 0, %s53
      %s55 = sphi 0, %s53
      %s56 = sphi 0, %s55
      %s70 = sphi 0, %s56
      %s74 = sphi 0, %s74
      %s76 = sphi 0, %s74
      %s77 = sphi 0, %s76
      %s91 = sphi 0, %s77
      %s97 = sphi 0, %s99
      %s100 = sphi 0, %s97
      %s101 = sphi 0, %s100
      %s117 = sphi 0, %s101
      %s121 = sphi 0, %s121
      %s123 = sphi 0, %s121
      %s124 = sphi 0, %s123
      %s138 = sphi 0, %s124
      %s142 = sphi 0, %s142
      %s144 = sphi 0, %s142
      %s145 = sphi 0, %s144
      %s159 = sphi 0, %s145
      %s165 = sphi 0, %s167
      %s168 = sphi 0, %s165
      %s169 = sphi 0, %s168
      %s185 = sphi 0, %s169
      %s191 = sphi 0, %s193
      %s194 = sphi 0, %s191
      %s195 = sphi 0, %s194
      %s211 = sphi 0, %s195
      %s217 = sphi 0, %s219
      %s220 = sphi 0, %s217
      %s221 = sphi 0, %s220
      %s237 = sphi 0, %s221
      %s243 = sphi 0, %s245
      %s246 = sphi 0, %s243
      %s247 = sphi 0, %s246
      %s263 = sphi 0, %s247
    $region4: #{pedestrain_sam2_forward.2} parent=1 // loop_header_branch
      %22 = sbr.rel (%p20) target = $region8
    $region5: #{pedestrain_sam2_forward.2} parent=1 // loop_body
      %s24 = ssub.s32 %s19, 1
      %s25 = ssub.s32 %s19, 2
      %s26 = sadd.s32 %s19, 1
      %s27 = ssub.s32 %s19, %s26
      %p28 = scmp.eq.s32.totalorder %s27, 0
      %s30 = sadd.s32 %s29, 1
      %s31 = scalar_select %p28, %s29, %s30
      %p34 = pneg %p28
      %p35 = scmp.eq.s32.totalorder %s19, 1
      %p36 = por %p34, %p35
      %p37 = scmp.ne.s32.totalorder %s29, %s32
      %p38 = scmp.eq.s32.totalorder %s19, 0
      %p39 = por %p37, %p38
      %p40 = scmp.ne.s32.totalorder %s29, %s32
      %p41 = scmp.eq.s32.totalorder %s24, 1
      %p42 = por %p40, %p41
      %p43 = scmp.ne.s32.totalorder %s32, %s33
      %p44 = scmp.eq.s32.totalorder %s24, 0
      %p45 = por %p43, %p44
      %p46 = scmp.ne.s32.totalorder %s32, %s33
      %p47 = scmp.eq.s32.totalorder %s25, 1
      %p48 = por %p46, %p47
      %p50 = scmp.ne.s32.totalorder %s33, %s49
      %p51 = scmp.eq.s32.totalorder %s25, 0
      %p52 = por %p50, %p51
      %s54 = sadd.s32 %s53, 1
      %p57 = scmp.eq.s32.totalorder %s19, 1
      %p58 = scmp.ne.s32.totalorder %s53, %s55
      %p59 = scmp.eq.s32.totalorder %s19, 0
      %p60 = por %p58, %p59
      %p61 = scmp.ne.s32.totalorder %s53, %s55
      %p62 = scmp.eq.s32.totalorder %s24, 1
      %p63 = por %p61, %p62
      %p64 = scmp.ne.s32.totalorder %s55, %s56
      %p65 = scmp.eq.s32.totalorder %s24, 0
      %p66 = por %p64, %p65
      %p67 = scmp.ne.s32.totalorder %s55, %s56
      %p68 = scmp.eq.s32.totalorder %s25, 1
      %p69 = por %p67, %p68
      %p71 = scmp.ne.s32.totalorder %s56, %s70
      %p72 = scmp.eq.s32.totalorder %s25, 0
      %p73 = por %p71, %p72
      %s75 = sadd.s32 %s74, 1
      %p78 = scmp.eq.s32.totalorder %s19, 1
      %p79 = scmp.ne.s32.totalorder %s74, %s76
      %p80 = scmp.eq.s32.totalorder %s19, 0
      %p81 = por %p79, %p80
      %p82 = scmp.ne.s32.totalorder %s74, %s76
      %p83 = scmp.eq.s32.totalorder %s24, 1
      %p84 = por %p82, %p83
      %p85 = scmp.ne.s32.totalorder %s76, %s77
      %p86 = scmp.eq.s32.totalorder %s24, 0
      %p87 = por %p85, %p86
      %p88 = scmp.ne.s32.totalorder %s76, %s77
      %p89 = scmp.eq.s32.totalorder %s25, 1
      %p90 = por %p88, %p89
      %p92 = scmp.ne.s32.totalorder %s77, %s91
      %p93 = scmp.eq.s32.totalorder %s25, 0
      %p94 = por %p92, %p93
      %s95 = ssub.s32 %s19, %s26
      %p96 = scmp.eq.s32.totalorder %s95, 0
      %s98 = sadd.s32 %s97, 1
      %s99 = scalar_select %p96, %s97, %s98
      %p102 = pneg %p96
      %p103 = scmp.eq.s32.totalorder %s19, 1
      %p104 = por %p102, %p103
      %p105 = scmp.ne.s32.totalorder %s97, %s100
      %p106 = scmp.eq.s32.totalorder %s19, 0
      %p107 = por %p105, %p106
      %p108 = scmp.ne.s32.totalorder %s97, %s100
      %p109 = scmp.eq.s32.totalorder %s24, 1
      %p110 = por %p108, %p109
      %p111 = scmp.ne.s32.totalorder %s100, %s101
      %p112 = scmp.eq.s32.totalorder %s24, 0
      %p113 = por %p111, %p112
      %p114 = scmp.ne.s32.totalorder %s100, %s101
      %p115 = scmp.eq.s32.totalorder %s25, 1
      %p116 = por %p114, %p115
      %p118 = scmp.ne.s32.totalorder %s101, %s117
      %p119 = scmp.eq.s32.totalorder %s25, 0
      %p120 = por %p118, %p119
      %s122 = sadd.s32 %s121, 1
      %p125 = scmp.eq.s32.totalorder %s19, 1
      %p126 = scmp.ne.s32.totalorder %s121, %s123
      %p127 = scmp.eq.s32.totalorder %s19, 0
      %p128 = por %p126, %p127
      %p129 = scmp.ne.s32.totalorder %s121, %s123
      %p130 = scmp.eq.s32.totalorder %s24, 1
      %p131 = por %p129, %p130
      %p132 = scmp.ne.s32.totalorder %s123, %s124
      %p133 = scmp.eq.s32.totalorder %s24, 0
      %p134 = por %p132, %p133
      %p135 = scmp.ne.s32.totalorder %s123, %s124
      %p136 = scmp.eq.s32.totalorder %s25, 1
      %p137 = por %p135, %p136
      %p139 = scmp.ne.s32.totalorder %s124, %s138
      %p140 = scmp.eq.s32.totalorder %s25, 0
      %p141 = por %p139, %p140
      %s143 = sadd.s32 %s142, 1
      %p146 = scmp.eq.s32.totalorder %s19, 1
      %p147 = scmp.ne.s32.totalorder %s142, %s144
      %p148 = scmp.eq.s32.totalorder %s19, 0
      %p149 = por %p147, %p148
      %p150 = scmp.ne.s32.totalorder %s142, %s144
      %p151 = scmp.eq.s32.totalorder %s24, 1
      %p152 = por %p150, %p151
      %p153 = scmp.ne.s32.totalorder %s144, %s145
      %p154 = scmp.eq.s32.totalorder %s24, 0
      %p155 = por %p153, %p154
      %p156 = scmp.ne.s32.totalorder %s144, %s145
      %p157 = scmp.eq.s32.totalorder %s25, 1
      %p158 = por %p156, %p157
      %p160 = scmp.ne.s32.totalorder %s145, %s159
      %p161 = scmp.eq.s32.totalorder %s25, 0
      %p162 = por %p160, %p161
      %s163 = ssub.s32 %s19, %s26
      %p164 = scmp.eq.s32.totalorder %s163, 0
      %s166 = sadd.s32 %s165, 1
      %s167 = scalar_select %p164, %s165, %s166
      %p170 = pneg %p164
      %p171 = scmp.eq.s32.totalorder %s19, 1
      %p172 = por %p170, %p171
      %p173 = scmp.ne.s32.totalorder %s165, %s168
      %p174 = scmp.eq.s32.totalorder %s19, 0
      %p175 = por %p173, %p174
      %p176 = scmp.ne.s32.totalorder %s165, %s168
      %p177 = scmp.eq.s32.totalorder %s24, 1
      %p178 = por %p176, %p177
      %p179 = scmp.ne.s32.totalorder %s168, %s169
      %p180 = scmp.eq.s32.totalorder %s24, 0
      %p181 = por %p179, %p180
      %p182 = scmp.ne.s32.totalorder %s168, %s169
      %p183 = scmp.eq.s32.totalorder %s25, 1
      %p184 = por %p182, %p183
      %p186 = scmp.ne.s32.totalorder %s169, %s185
      %p187 = scmp.eq.s32.totalorder %s25, 0
      %p188 = por %p186, %p187
      %s189 = ssub.s32 %s19, %s26
      %p190 = scmp.eq.s32.totalorder %s189, 0
      %s192 = sadd.s32 %s191, 1
      %s193 = scalar_select %p190, %s191, %s192
      %p196 = pneg %p190
      %p197 = scmp.eq.s32.totalorder %s19, 1
      %p198 = por %p196, %p197
      %p199 = scmp.ne.s32.totalorder %s191, %s194
      %p200 = scmp.eq.s32.totalorder %s19, 0
      %p201 = por %p199, %p200
      %p202 = scmp.ne.s32.totalorder %s191, %s194
      %p203 = scmp.eq.s32.totalorder %s24, 1
      %p204 = por %p202, %p203
      %p205 = scmp.ne.s32.totalorder %s194, %s195
      %p206 = scmp.eq.s32.totalorder %s24, 0
      %p207 = por %p205, %p206
      %p208 = scmp.ne.s32.totalorder %s194, %s195
      %p209 = scmp.eq.s32.totalorder %s25, 1
      %p210 = por %p208, %p209
      %p212 = scmp.ne.s32.totalorder %s195, %s211
      %p213 = scmp.eq.s32.totalorder %s25, 0
      %p214 = por %p212, %p213
      %s215 = ssub.s32 %s19, %s26
      %p216 = scmp.eq.s32.totalorder %s215, 0
      %s218 = sadd.s32 %s217, 1
      %s219 = scalar_select %p216, %s217, %s218
      %p222 = pneg %p216
      %p223 = scmp.eq.s32.totalorder %s19, 1
      %p224 = por %p222, %p223
      %p225 = scmp.ne.s32.totalorder %s217, %s220
      %p226 = scmp.eq.s32.totalorder %s19, 0
      %p227 = por %p225, %p226
      %p228 = scmp.ne.s32.totalorder %s217, %s220
      %p229 = scmp.eq.s32.totalorder %s24, 1
      %p230 = por %p228, %p229
      %p231 = scmp.ne.s32.totalorder %s220, %s221
      %p232 = scmp.eq.s32.totalorder %s24, 0
      %p233 = por %p231, %p232
      %p234 = scmp.ne.s32.totalorder %s220, %s221
      %p235 = scmp.eq.s32.totalorder %s25, 1
      %p236 = por %p234, %p235
      %p238 = scmp.ne.s32.totalorder %s221, %s237
      %p239 = scmp.eq.s32.totalorder %s25, 0
      %p240 = por %p238, %p239
      %s241 = ssub.s32 %s19, %s26
      %p242 = scmp.eq.s32.totalorder %s241, 0
      %s244 = sadd.s32 %s243, 1
      %s245 = scalar_select %p242, %s243, %s244
      %p248 = pneg %p242
      %p249 = scmp.eq.s32.totalorder %s19, 1
      %p250 = por %p248, %p249
      %p251 = scmp.ne.s32.totalorder %s243, %s246
      %p252 = scmp.eq.s32.totalorder %s19, 0
      %p253 = por %p251, %p252
      %p254 = scmp.ne.s32.totalorder %s243, %s246
      %p255 = scmp.eq.s32.totalorder %s24, 1
      %p256 = por %p254, %p255
      %p257 = scmp.ne.s32.totalorder %s246, %s247
      %p258 = scmp.eq.s32.totalorder %s24, 0
      %p259 = por %p257, %p258
      %p260 = scmp.ne.s32.totalorder %s246, %s247
      %p261 = scmp.eq.s32.totalorder %s25, 1
      %p262 = por %p260, %p261
      %p264 = scmp.ne.s32.totalorder %s247, %s263
      %p265 = scmp.eq.s32.totalorder %s25, 0
      %p266 = por %p264, %p265
      %p267 = scmp.le.s32.totalorder 1, %s19
      %p268 = scmp.lt.s32.totalorder %s19, 3
      %p269 = pnand %p267, %p268
      %p270 = pneg %p269
      // Predicated region
      $region9: #{pedestrain_sam2_forward.2} parent=5 // pred_check
        _
      $region10: #{pedestrain_sam2_forward.2} parent=5 // pred_check_branch
        %272 = sbr.rel (%p269) target = $region12
      $region11: #{pedestrain_sam2_forward.2} parent=5 // pred_region
        %s273 = ssub.s32 %s19, 1
        // Predicated region
        $region13: #{pedestrain_sam2_forward.2} parent=11 // pred_check
          %p274 = pneg %p66
        $region14: #{pedestrain_sam2_forward.2} parent=11 // pred_check_branch
          %276 = sbr.rel (%p274) target = $region16
        $region15: #{pedestrain_sam2_forward.2} parent=11 // pred_region
          _
        $region16: #{pedestrain_sam2_forward.2} parent=11 // pred_fallthru
          _
        // Predicated region
        $region17: #{pedestrain_sam2_forward.2} parent=11 // pred_check
          %p277 = pneg %p87
        $region18: #{pedestrain_sam2_forward.2} parent=11 // pred_check_branch
          %279 = sbr.rel (%p277) target = $region20
        $region19: #{pedestrain_sam2_forward.2} parent=11 // pred_region
          _
        $region20: #{pedestrain_sam2_forward.2} parent=11 // pred_fallthru
          _
        // Predicated region
        $region21: #{pedestrain_sam2_forward.2} parent=11 // pred_check
          %p280 = pneg %p134
        $region22: #{pedestrain_sam2_forward.2} parent=11 // pred_check_branch
          %282 = sbr.rel (%p280) target = $region24
        $region23: #{pedestrain_sam2_forward.2} parent=11 // pred_region
          _
        $region24: #{pedestrain_sam2_forward.2} parent=11 // pred_fallthru
          _
        // Predicated region
        $region25: #{pedestrain_sam2_forward.2} parent=11 // pred_check
          %p283 = pneg %p155
        $region26: #{pedestrain_sam2_forward.2} parent=11 // pred_check_branch
          %285 = sbr.rel (%p283) target = $region28
        $region27: #{pedestrain_sam2_forward.2} parent=11 // pred_region
          _
        $region28: #{pedestrain_sam2_forward.2} parent=11 // pred_fallthru
          _
      $region12: #{pedestrain_sam2_forward.2} parent=5 // pred_fallthru
        _
      %p286 = scmp.lt.s32.totalorder %s19, 2
      // Predicated region
      $region29: #{pedestrain_sam2_forward.2} parent=5 // pred_check
        %p287 = pneg %p286
      $region30: #{pedestrain_sam2_forward.2} parent=5 // pred_check_branch
        %289 = sbr.rel (%p287) target = $region32
      $region31: #{pedestrain_sam2_forward.2} parent=5 // pred_region
        // Predicated region
        $region33: #{pedestrain_sam2_forward.2} parent=31 // pred_check
          %p290 = pneg %p39
        $region34: #{pedestrain_sam2_forward.2} parent=31 // pred_check_branch
          %292 = sbr.rel (%p290) target = $region36
        $region35: #{pedestrain_sam2_forward.2} parent=31 // pred_region
          %p293 = scmp.lt.s32.totalorder %s19, 1
          %s294 = scalar_select %p293, %s19, 1
          %s295 = smul.addr %s294, 12
          %s296 = smul.addr %s295, 4
          %s297 = scalar_lea.vmem %s0, %s296
        $region36: #{pedestrain_sam2_forward.2} parent=31 // pred_fallthru
          _
        // Predicated region
        $region37: #{pedestrain_sam2_forward.2} parent=31 // pred_check
          %p298 = pneg %p107
        $region38: #{pedestrain_sam2_forward.2} parent=31 // pred_check_branch
          %300 = sbr.rel (%p298) target = $region40
        $region39: #{pedestrain_sam2_forward.2} parent=31 // pred_region
          %p301 = scmp.lt.s32.totalorder %s19, 1
          %s302 = scalar_select %p301, %s19, 1
          %s303 = smul.addr %s302, 2
          %s304 = scalar_lea.vmem %s3, %s303
        $region40: #{pedestrain_sam2_forward.2} parent=31 // pred_fallthru
          _
      $region32: #{pedestrain_sam2_forward.2} parent=5 // pred_fallthru
        _
      %p305 = scmp.le.s32.totalorder 1, %s19
      %p306 = scmp.lt.s32.totalorder %s19, 3
      %p307 = pnand %p305, %p306
      %p308 = pneg %p307
      // Predicated region
      $region41: #{pedestrain_sam2_forward.2} parent=5 // pred_check
        _
      $region42: #{pedestrain_sam2_forward.2} parent=5 // pred_check_branch
        %310 = sbr.rel (%p307) target = $region44
      $region43: #{pedestrain_sam2_forward.2} parent=5 // pred_region
        %s311 = ssub.s32 %s19, 1
        %p312 = scmp.lt.s32.totalorder %s24, 1
        %s313 = scalar_select %p312, %s24, 1
        %s314 = smul.addr %s313, 12
        %s315 = smul.addr %s314, 4
        %s316 = scalar_lea.vmem %s0, %s315
        %p317 = pneg %p45
        %p318 = pneg %p42
        %p319 = pneg %p66
        %p320 = pneg %p63
        %p321 = pneg %p87
        %p322 = pneg %p84
        %p323 = scmp.lt.s32.totalorder %s24, 1
        %s324 = scalar_select %p323, %s24, 1
        %s325 = smul.addr %s324, 2
        %s326 = scalar_lea.vmem %s3, %s325
        %p327 = pneg %p113
        %p328 = pneg %p110
        %p329 = pneg %p134
        %p330 = pneg %p131
        %p331 = pneg %p155
        %p332 = pneg %p152
        %p333 = pneg %p181
        %p334 = pneg %p178
        %p335 = scmp.lt.s32.totalorder %s24, 1
        %s336 = scalar_select %p335, %s24, 1
        %s337 = smul.addr %s336, 2
        %s338 = smul.addr %s337, 4
        %s339 = scalar_lea.vmem %s6, %s338
        %p340 = pneg %p207
        %p341 = pneg %p204
        %s342 = sand.u32 %s194, 1
        %s343 = scalar_lea.sflag [#allocation3], %s342
        %s344 = sand.u32 %s194, 1
        %s345 = scalar_lea.vmem [#allocation2], %s344
        %p346 = pneg %p233
        %p347 = pneg %p230
        %p348 = scmp.lt.s32.totalorder %s24, 1
        %s349 = scalar_select %p348, %s24, 1
        %s350 = smul.addr %s349, 2
        %s351 = scalar_lea.vmem %s8, %s350
        %p352 = pneg %p259
        %p353 = pneg %p256
        %p354 = scmp.lt.s32.totalorder %s24, 1
        %s355 = scalar_select %p354, %s24, 1
        %s356 = scalar_lea.vmem %s9, %s355
        %p357 = scmp.lt.s32.totalorder %s24, 1
        %s358 = scalar_select %p357, %s24, 1
        %s359 = smul.addr %s358, 12
        %s360 = smul.addr %s359, 4
        %s361 = scalar_lea.vmem %s0, %s360
        %p362 = scmp.lt.s32.totalorder %s24, 1
        %s363 = scalar_select %p362, %s24, 1
        %s364 = smul.addr %s363, 2
        %s365 = scalar_lea.vmem %s3, %s364
        %p366 = scmp.lt.s32.totalorder %s24, 1
        %s367 = scalar_select %p366, %s24, 1
        %s368 = smul.addr %s367, 2
        %s369 = smul.addr %s368, 4
        %s370 = scalar_lea.vmem %s6, %s369
        %p371 = scmp.lt.s32.totalorder %s24, 1
        %s372 = scalar_select %p371, %s24, 1
        %s373 = smul.addr %s372, 2
        %s374 = scalar_lea.vmem %s8, %s373
        %p375 = scmp.lt.s32.totalorder %s24, 1
        %s376 = scalar_select %p375, %s24, 1
        %s377 = scalar_lea.vmem %s9, %s376
        %v379 = vld [vmem:[%s361] sm:$0xff]
        %v380 = vld [vmem:[%s361 + $0x8] sm:$0xff]
        %v381 = vld [vmem:[%s361 + $0x10] sm:$0xff]
        %v382 = vld [vmem:[%s361 + $0x18] sm:$0xff]
        %v383 = vld [vmem:[%s361 + $0x20] sm:$0xff]
        %v384 = vld [vmem:[%s361 + $0x28] sm:$0xff]
        %v385 = vld [vmem:[%s1] sm:$0xf]
        %v386 = vld [vmem:[%s1 + $0x4] sm:$0xf]
        %v387 = vld [vmem:[%s1 + $0x8] sm:$0xf]
        %v388 = vld [vmem:[%s1 + $0xc] sm:$0xf]
        %v389 = vld [vmem:[%s2] sm:$0xff]
        %v390 = vld [vmem:[%s2 + $0x8] sm:$0xff]
        %v391 = vld [vmem:[%s2 + $0x10] sm:$0xff]
        %v392 = vld [vmem:[%s2 + $0x18] sm:$0xff]
        %v393 = vld [vmem:[%s2 + $0x20] sm:$0xff]
        %v394 = vld [vmem:[%s2 + $0x28] sm:$0xff]
        %v395 = vld [vmem:[%s2 + $0x30] sm:$0xff]
        %v396 = vld [vmem:[%s2 + $0x38] sm:$0xff]
        %v401 = vunpack.c.l.b16 %v385
        %v402 = vunpack.c.l.b16 %v386
        %v403 = vunpack.c.l.b16 %v387
        %v404 = vunpack.c.l.b16 %v388
        %v405 = vpack.c.b16 %v402, %v401
        %v406 = vpack.c.b16 %v404, %v403
        %v413 = vunpack.c.l.b16 %v379
        %v414 = vunpack.c.h.b16 %v379
        %v415 = vunpack.c.l.b16 %v380
        %v416 = vunpack.c.h.b16 %v380
        %v417 = vunpack.c.l.b16 %v381
        %v418 = vunpack.c.h.b16 %v381
        %v419 = vunpack.c.l.b16 %v382
        %v420 = vunpack.c.h.b16 %v382
        %v421 = vunpack.c.l.b16 %v383
        %v422 = vunpack.c.h.b16 %v383
        %v423 = vunpack.c.l.b16 %v384
        %v424 = vunpack.c.h.b16 %v384
        %v425 = vpack.c.b16 %v415, %v413
        %v426 = vpack.c.b16 %v416, %v414
        %v427 = vpack.c.b16 %v419, %v417
        %v428 = vpack.c.b16 %v420, %v418
        %v429 = vpack.c.b16 %v423, %v421
        %v430 = vpack.c.b16 %v424, %v422
        %vm437 = vcmask 392192
        %v439 = vsel %vm437, %v405, 0
        %v442 = vsel %vm437, %v406, 0
        %444 = vmatprep.subr.bf16.mxu0 %v426
        %445 = vmatpush1.bf16.msra.mxu0 %v425
        %446 = vmatprep.subr.bf16.mxu0 %v428
        %447 = vmatpush1.bf16.msra.mxu0 %v427
        %448 = vmatprep.subr.bf16.mxu0 %v430
        %449 = vmatpush1.bf16.msra.mxu0 %v429
        %450 = vmatprep.subr.bf16.mxu0 0
        %451 = vmatpush1.bf16.msra.mxu0 0
        %452 = vmatprep.subr.bf16.mxu0 0
        %453 = vmatpush1.bf16.msra.mxu0 0
        %454 = vmatprep.subr.bf16.mxu0 0
        %455 = vmatpush1.bf16.msra.mxu0 0
        %456 = vmatprep.subr.bf16.mxu0 0
        %457 = vmatpush1.bf16.msra.mxu0 0
        %458 = vmatprep.subr.bf16.mxu0 0
        %459 = vmatpush1.bf16.msra.mxu0 0
        %460 = vmatprep.subr.bf16.mxu0 0
        %461 = vmatpush1.bf16.msra.mxu0 0
        %462 = vmatprep.subr.bf16.mxu0 0
        %463 = vmatpush1.bf16.msra.mxu0 0
        %464 = vmatprep.subr.bf16.mxu0 0
        %465 = vmatpush1.bf16.msra.mxu0 0
        %466 = vmatprep.subr.bf16.mxu0 0
        %467 = vmatpush1.bf16.msra.mxu0 0
        %468 = vmatprep.subr.bf16.mxu0 0
        %469 = vmatpush1.bf16.msra.mxu0 0
        %470 = vmatprep.subr.bf16.mxu0 0
        %471 = vmatpush1.bf16.msra.mxu0 0
        %472 = vmatprep.subr.bf16.mxu0 0
        %473 = vmatpush1.bf16.msra.mxu0 0
        %474 = vmatprep.subr.bf16.mxu0 0
        %475 = vmatpush1.bf16.msra.mxu0 0
        %476 = vmatprep.mubr.bf16.mxu0 0
        %477 = vmatmul.mubr.bf16.gmra.mrb[0].mxu0 %v439
        %v478 = vpop.f32.mrb[0].mxu0
        %v479 = vadd.f32 %v389, %v478
        %v480 = vpop.f32.mrb[0].mxu0
        %v481 = vadd.f32 %v390, %v480
        %v482 = vpop.f32.mrb[0].mxu0
        %v483 = vadd.f32 %v391, %v482
        %v484 = vpop.f32.mrb[0].mxu0
        %v485 = vadd.f32 %v392, %v484
        %486 = vmatprep.mubr.bf16.mxu0 0
        %487 = vmatmul.mubr.bf16.gmra.mrb[0].mxu0 %v442
        %v488 = vpop.f32.mrb[0].mxu0
        %v489 = vadd.f32 %v393, %v488
        %v490 = vpop.f32.mrb[0].mxu0
        %v491 = vadd.f32 %v394, %v490
        %v492 = vpop.f32.mrb[0].mxu0
        %v493 = vadd.f32 %v395, %v492
        %v494 = vpop.f32.mrb[0].mxu0
        %v495 = vadd.f32 %v396, %v494
        %496 = vdwg.mxu0
        %v497 = vld [vmem:[%s365] sm:$0x3]
        %v498 = vpack.c.bf16 %v483, %v479
        %v499 = vpack.c.bf16 %v485, %v481
        %v500 = vpack.c.bf16 %v493, %v489
        %v501 = vpack.c.bf16 %v495, %v491
        %vm502 = vcmask 261120
        %v504 = vsel %vm502, %v497, 0
        %506 = vmatprep.subr.bf16.mxu0 %v499
        %507 = vmatpush1.bf16.msra.mxu0 %v498
        %508 = vmatprep.subr.bf16.mxu0 %v501
        %509 = vmatpush1.bf16.msra.mxu0 %v500
        %510 = vmatprep.subr.bf16.mxu0 0
        %511 = vmatpush1.bf16.msra.mxu0 0
        %512 = vmatprep.subr.bf16.mxu0 0
        %513 = vmatpush1.bf16.msra.mxu0 0
        %514 = vmatprep.subr.bf16.mxu0 0
        %515 = vmatpush1.bf16.msra.mxu0 0
        %516 = vmatprep.subr.bf16.mxu0 0
        %517 = vmatpush1.bf16.msra.mxu0 0
        %518 = vmatprep.subr.bf16.mxu0 0
        %519 = vmatpush1.bf16.msra.mxu0 0
        %520 = vmatprep.subr.bf16.mxu0 0
        %521 = vmatpush1.bf16.msra.mxu0 0
        %522 = vmatprep.subr.bf16.mxu0 0
        %523 = vmatpush1.bf16.msra.mxu0 0
        %524 = vmatprep.subr.bf16.mxu0 0
        %525 = vmatpush1.bf16.msra.mxu0 0
        %526 = vmatprep.subr.bf16.mxu0 0
        %527 = vmatpush1.bf16.msra.mxu0 0
        %528 = vmatprep.subr.bf16.mxu0 0
        %529 = vmatpush1.bf16.msra.mxu0 0
        %530 = vmatprep.subr.bf16.mxu0 0
        %531 = vmatpush1.bf16.msra.mxu0 0
        %532 = vmatprep.subr.bf16.mxu0 0
        %533 = vmatpush1.bf16.msra.mxu0 0
        %534 = vmatprep.subr.bf16.mxu0 0
        %535 = vmatpush1.bf16.msra.mxu0 0
        %536 = vmatprep.subr.bf16.mxu0 0
        %537 = vmatpush1.bf16.msra.mxu0 0
        %538 = vmatprep.mubr.bf16.mxu0 0
        %539 = vmatmul.mubr.bf16.gmra.mrb[0].mxu0 %v504
        %v540 = vpop.f32.mrb[0].mxu0
        %v541 = vadd.f32 0.0, %v540
        %v542 = vpop.f32.mrb[0].mxu0
        %v543 = vadd.f32 0.0, %v542
        %v544 = vpop.f32.mrb[0].mxu0
        %v545 = vpop.f32.mrb[0].mxu0
        %546 = vdwg.mxu0
        %v549 = vcombine.low %v541, %v543
        %551 = vst [vmem:[%s370] sm:$0xff] %v549
        %v552 = vadd.f32 %v479, %v481
        %553 = vadd.xlane.f32.xlu0 %v552
        %v554 = vpop.xlane.xlu0 %553
        %v555 = vadd.f32 %v483, %v485
        %556 = vadd.xlane.f32.xlu0 %v555
        %v557 = vpop.xlane.xlu0 %556
        %v558 = vadd.f32 %v489, %v491
        %559 = vadd.xlane.f32.xlu0 %v558
        %v560 = vpop.xlane.xlu0 %559
        %v561 = vadd.f32 %v493, %v495
        %562 = vadd.xlane.f32.xlu0 %v561
        %v563 = vpop.xlane.xlu0 %562
        %v564 = vrcp.pop 256.0
        %v565 = vmul.f32 %v554, %v564
        %v566 = vmul.f32 %v557, %v564
        %v567 = vmul.f32 %v560, %v564
        %v568 = vmul.f32 %v563, %v564
        %v569 = vld [vmem:[%s4] sm:$0xff]
        %v570 = vld [vmem:[%s4 + $0x8] sm:$0xff]
        %v571 = vld [vmem:[%s4 + $0x10] sm:$0xff]
        %v572 = vld [vmem:[%s4 + $0x18] sm:$0xff]
        %v573 = vmul.f32 %v565, %v569
        %v574 = vmul.f32 %v566, %v570
        %v575 = vmul.f32 %v567, %v571
        %v576 = vmul.f32 %v568, %v572
        %vm577 = vcmask 31744
        %v578 = vsel %vm577, %v573, 0.0
        %v579 = vsel %vm577, %v574, 0.0
        %v580 = vadd.f32 %v578, %v579
        %v581 = vsel %vm577, %v575, 0.0
        %v582 = vadd.f32 %v580, %v581
        %v583 = vsel %vm577, %v576, 0.0
        %v584 = vadd.f32 %v582, %v583
        %v585 = vrot.slane %v584, 4
        %v586 = vadd.f32 %v584, %v585
        %v587 = vrot.slane %v586, 2
        %v588 = vadd.f32 %v586, %v587
        %v589 = vrot.slane %v588, 1
        %v590 = vadd.f32 %v588, %v589
        %v591 = vld [vmem:[%s5] sm:$0x1]
        %v592 = vadd.f32 %v590, %v591
        %vm593 = vcmask 24576
        %594 = vst.msk [vmem:[%s345] sm:$0x1] %vm593, %v592
        %v595 = vsel %vm593, %v592, -inf
        %596 = vmax.xlane.f32.xlu0 %v595
        %v597 = vpop.xlane.xlu0 %596
        %v598 = vlaneseq
        %v599 = vand.u32 %v598, 127
        %vm600 = vcmp.eq.f32.partialorder %v592, %v597
        %v601 = vsel %vm600, %v599, 4
        %v602 = vsel %vm593, %v601, 2147483647
        %v603 = vand.u32 %v602, 65535
        %v604 = vshra.s32 %v602, 16
        %v605 = vcvt.s32.f32 %v603
        %v606 = vcvt.s32.f32 %v604
        %607 = vmin.xlane.f32.xlu0 %v606
        %v608 = vpop.xlane.xlu0 %607
        %vm609 = vcmp.eq.f32.partialorder %v606, %v608
        %v610 = vsel %vm609, %v605, inf
        %611 = vmin.xlane.f32.xlu0 %v610
        %v612 = vpop.xlane.xlu0 %611
        %v613 = vcvt.f32.s32 %v612
        %v614 = vcvt.f32.s32 %v608
        %v615 = vshll.u32 %v614, 16
        %v616 = vadd.s32 %v615, %v613
        %v617 = vlaneseq
        %v618 = vshrl.u32 %v617, 7
        %v619 = vlaneseq
        %v620 = vshrl.u32 %v619, 7
        %v621 = vsub.s32 0, %v620
        %v622 = vrot.slane %v616, %v621
        %vm623 = vcmp.eq.s32.totalorder %v618, %v622
        %v624 = vsel %vm623, 1, 0
        %v625 = vcvt.s32.f32 %v624
        %v626 = vmul.f32 %v541, %v625
        %v627 = vmul.f32 %v543, %v625
        %vm628 = vcmask 1043456
        %v629 = vsel %vm628, %v626, 0.0
        %v630 = vrot.slane %v629, 4
        %v631 = vadd.f32 %v629, %v630
        %v632 = vrot.slane %v631, 2
        %v633 = vadd.f32 %v631, %v632
        %v634 = vrot.slane %v633, 1
        %v635 = vadd.f32 %v633, %v634
        %v636 = vsel %vm628, %v627, 0.0
        %v637 = vrot.slane %v636, 4
        %v638 = vadd.f32 %v636, %v637
        %v639 = vrot.slane %v638, 2
        %v640 = vadd.f32 %v638, %v639
        %v641 = vrot.slane %v640, 1
        %v642 = vadd.f32 %v640, %v641
        %vm643 = vcmp.gt.f32.partialorder %v635, 0.0
        %vm644 = vcmp.gt.f32.partialorder %v642, 0.0
        %v645 = vsel %vm643, 1, 0
        %v646 = vsel %vm644, 1, 0
        %v647 = vcvt.s32.f32 %v645
        %v648 = vcvt.s32.f32 %v646
        %v651 = vcombine.low %v647, %v648
        %v653 = vunpack.c.l.s4 1966171168
        %v654 = vunpack.c.0.s8 %v653
        %v655 = vlaneseq
        %v656 = vshrl.u32 %v655, 7
        %v657 = vsub.s32 %v654, %v656
        %v658 = vrot.slane %v651, %v657
        %v660 = vunpack.c.l.s4 1966171168
        %v661 = vunpack.c.0.s8 %v660
        %v662 = vlaneseq
        %v663 = vshrl.u32 %v662, 7
        %v664 = vsub.s32 %v661, %v663
        %v665 = vrot.slane %v658, %v664
        %v667 = vlaneseq
        %vm668 = vcmp.ge.s32.totalorder %v667, 0
        %vm669 = vcmp.lt.s32.totalorder %v667, 256
        %vm670 = vmand %vm668, %vm669
        %671 = vst.msk [vmem:[%s374] sm:$0x3] %vm670, %v665
        %v672 = vadd.s32 %v599, 128
        %v673 = vadd.s32 %v618, 8
        %v674 = vshra.s32 %v599, 4
        %v675 = vshra.s32 %v672, 4
        %vm676 = vcmp.eq.s32.totalorder %v674, %v618
        %vm677 = vcmp.eq.s32.totalorder %v675, %v618
        %vm678 = vcmp.eq.s32.totalorder %v674, %v673
        %vm679 = vcmp.eq.s32.totalorder %v675, %v673
        %v680 = vsel %vm676, 1, 0
        %v681 = vsel %vm677, 1, 0
        %v682 = vsel %vm678, 1, 0
        %v683 = vsel %vm679, 1, 0
        %v684 = vcvt.s32.f32 %v680
        %v685 = vcvt.s32.f32 %v681
        %v686 = vcvt.s32.f32 %v682
        %v687 = vcvt.s32.f32 %v683
        %v688 = vand.u32 %v599, 15
        %v689 = vand.u32 %v672, 15
        %vm690 = vcmp.eq.s32.totalorder %v688, %v618
        %vm691 = vcmp.eq.s32.totalorder %v689, %v618
        %vm692 = vcmp.eq.s32.totalorder %v688, %v673
        %vm693 = vcmp.eq.s32.totalorder %v689, %v673
        %v694 = vsel %vm690, 1, 0
        %v695 = vsel %vm691, 1, 0
        %v696 = vsel %vm692, 1, 0
        %v697 = vsel %vm693, 1, 0
        %v698 = vcvt.s32.f32 %v694
        %v699 = vcvt.s32.f32 %v695
        %v700 = vcvt.s32.f32 %v696
        %v701 = vcvt.s32.f32 %v697
        %v702 = vmul.f32 %v647, %v684
        %v703 = vmul.f32 %v648, %v685
        %v704 = vmul.f32 %v647, %v686
        %v705 = vmul.f32 %v648, %v687
        %v706 = vmax.f32 %v702, %v703
        %707 = vmax.xlane.f32.xlu0 %v706
        %v708 = vpop.xlane.xlu0 %707
        %v709 = vmax.f32 %v704, %v705
        %710 = vmax.xlane.f32.xlu0 %v709
        %v711 = vpop.xlane.xlu0 %710
        %vm712 = vcmp.gt.f32.partialorder %v708, 0.0
        %vm713 = vcmp.gt.f32.partialorder %v711, 0.0
        %v714 = vmul.f32 %v647, %v698
        %v715 = vmul.f32 %v648, %v699
        %v716 = vmul.f32 %v647, %v700
        %v717 = vmul.f32 %v648, %v701
        %v718 = vmax.f32 %v714, %v715
        %719 = vmax.xlane.f32.xlu0 %v718
        %v720 = vpop.xlane.xlu0 %719
        %v721 = vmax.f32 %v716, %v717
        %722 = vmax.xlane.f32.xlu0 %v721
        %v723 = vpop.xlane.xlu0 %722
        %vm724 = vcmp.gt.f32.partialorder %v720, 0.0
        %vm725 = vcmp.gt.f32.partialorder %v723, 0.0
        %v726 = vsel %vm712, %v618, 16
        %v727 = vsel %vm713, %v673, 16
        %vm728 = vcmp.lt.s32.totalorder %v726, %v727
        %v729 = vsel %vm728, %v726, %v727
        %v730 = vrot.slane %v729, 4
        %vm731 = vcmp.lt.s32.totalorder %v729, %v730
        %v732 = vsel %vm731, %v729, %v730
        %v733 = vrot.slane %v732, 2
        %vm734 = vcmp.lt.s32.totalorder %v732, %v733
        %v735 = vsel %vm734, %v732, %v733
        %v736 = vrot.slane %v735, 1
        %vm737 = vcmp.lt.s32.totalorder %v735, %v736
        %v738 = vsel %vm737, %v735, %v736
        %v739 = vsel %vm712, %v618, 4294967295
        %v740 = vsel %vm713, %v673, 4294967295
        %vm741 = vcmp.gt.s32.totalorder %v739, %v740
        %v742 = vsel %vm741, %v739, %v740
        %v743 = vrot.slane %v742, 4
        %vm744 = vcmp.gt.s32.totalorder %v742, %v743
        %v745 = vsel %vm744, %v742, %v743
        %v746 = vrot.slane %v745, 2
        %vm747 = vcmp.gt.s32.totalorder %v745, %v746
        %v748 = vsel %vm747, %v745, %v746
        %v749 = vrot.slane %v748, 1
        %vm750 = vcmp.gt.s32.totalorder %v748, %v749
        %v751 = vsel %vm750, %v748, %v749
        %v752 = vsel %vm724, %v618, 16
        %v753 = vsel %vm725, %v673, 16
        %vm754 = vcmp.lt.s32.totalorder %v752, %v753
        %v755 = vsel %vm754, %v752, %v753
        %v756 = vrot.slane %v755, 4
        %vm757 = vcmp.lt.s32.totalorder %v755, %v756
        %v758 = vsel %vm757, %v755, %v756
        %v759 = vrot.slane %v758, 2
        %vm760 = vcmp.lt.s32.totalorder %v758, %v759
        %v761 = vsel %vm760, %v758, %v759
        %v762 = vrot.slane %v761, 1
        %vm763 = vcmp.lt.s32.totalorder %v761, %v762
        %v764 = vsel %vm763, %v761, %v762
        %v765 = vsel %vm724, %v618, 4294967295
        %v766 = vsel %vm725, %v673, 4294967295
        %vm767 = vcmp.gt.s32.totalorder %v765, %v766
        %v768 = vsel %vm767, %v765, %v766
        %v769 = vrot.slane %v768, 4
        %vm770 = vcmp.gt.s32.totalorder %v768, %v769
        %v771 = vsel %vm770, %v768, %v769
        %v772 = vrot.slane %v771, 2
        %vm773 = vcmp.gt.s32.totalorder %v771, %v772
        %v774 = vsel %vm773, %v771, %v772
        %v775 = vrot.slane %v774, 1
        %vm776 = vcmp.gt.s32.totalorder %v774, %v775
        %v777 = vsel %vm776, %v774, %v775
        %vm778 = vcmp.eq.s32.totalorder %v599, 0
        %v779 = vsel %vm778, %v738, 0
        %vm780 = vcmp.eq.s32.totalorder %v599, 1
        %v781 = vsel %vm780, %v751, 0
        %v782 = vadd.s32 %v779, %v781
        %vm783 = vcmp.eq.s32.totalorder %v599, 2
        %v784 = vsel %vm783, %v764, 0
        %v785 = vadd.s32 %v782, %v784
        %vm786 = vcmp.eq.s32.totalorder %v599, 3
        %v787 = vsel %vm786, %v777, 0
        %v788 = vadd.s32 %v785, %v787
        %789 = vst.msk [vmem:[%s377] sm:$0x1] %vm593, %v788
        %p790 = scmp.lt.s32.totalorder %s24, 1
        %s791 = scalar_select %p790, %s24, 1
        %s792 = smul.addr %s791, 2
        %s793 = smul.addr %s792, 4
        %s794 = scalar_lea.vmem %s6, %s793
        %s795 = sand.u32 %s194, 1
        %s796 = scalar_lea.sflag [#allocation3], %s795
        %s797 = sand.u32 %s194, 1
        %s798 = scalar_lea.vmem [#allocation2], %s797
        %p799 = scmp.lt.s32.totalorder %s24, 1
        %s800 = scalar_select %p799, %s24, 1
        %s801 = smul.addr %s800, 2
        %s802 = scalar_lea.vmem %s8, %s801
        %p803 = scmp.lt.s32.totalorder %s24, 1
        %s804 = scalar_select %p803, %s24, 1
        %s805 = scalar_lea.vmem %s9, %s804
        // Predicated region
        $region45: #{pedestrain_sam2_forward.2} parent=43 // pred_check
          %p806 = pneg %p178
        $region46: #{pedestrain_sam2_forward.2} parent=43 // pred_check_branch
          %808 = sbr.rel (%p806) target = $region48
        $region47: #{pedestrain_sam2_forward.2} parent=43 // pred_region
          _
        $region48: #{pedestrain_sam2_forward.2} parent=43 // pred_fallthru
          _
        // Predicated region
        $region49: #{pedestrain_sam2_forward.2} parent=43 // pred_check
          %p809 = pneg %p204
        $region50: #{pedestrain_sam2_forward.2} parent=43 // pred_check_branch
          %811 = sbr.rel (%p809) target = $region52
        $region51: #{pedestrain_sam2_forward.2} parent=43 // pred_region
          %s813 = ssub.s32 16, 16
          %814 = vsyncadd %s796, %s813
          %s815 = smul.addr %s24, 16
          %s816 = scalar_lea.hbm %s7, %s815
          %s818 = sshll.u32 %s798, 4
          %s819 = int_to_ptr.vmem [resolvable:$true] %s818
          %821 = dma.vmem_to_hbm [thread:$0]  %s819, 16, %s816, %s796
        $region52: #{pedestrain_sam2_forward.2} parent=43 // pred_fallthru
          _
        // Predicated region
        $region53: #{pedestrain_sam2_forward.2} parent=43 // pred_check
          %p822 = pneg %p230
        $region54: #{pedestrain_sam2_forward.2} parent=43 // pred_check_branch
          %824 = sbr.rel (%p822) target = $region56
        $region55: #{pedestrain_sam2_forward.2} parent=43 // pred_region
          _
        $region56: #{pedestrain_sam2_forward.2} parent=43 // pred_fallthru
          _
        // Predicated region
        $region57: #{pedestrain_sam2_forward.2} parent=43 // pred_check
          %p825 = pneg %p256
        $region58: #{pedestrain_sam2_forward.2} parent=43 // pred_check_branch
          %827 = sbr.rel (%p825) target = $region60
        $region59: #{pedestrain_sam2_forward.2} parent=43 // pred_region
          _
        $region60: #{pedestrain_sam2_forward.2} parent=43 // pred_fallthru
          _
      $region44: #{pedestrain_sam2_forward.2} parent=5 // pred_fallthru
        _
      %p828 = scmp.le.s32.totalorder 2, %s19
      // Predicated region
      $region61: #{pedestrain_sam2_forward.2} parent=5 // pred_check
        %p829 = pneg %p828
      $region62: #{pedestrain_sam2_forward.2} parent=5 // pred_check_branch
        %831 = sbr.rel (%p829) target = $region64
      $region63: #{pedestrain_sam2_forward.2} parent=5 // pred_region
        %s832 = ssub.s32 %s19, 2
        // Predicated region
        $region65: #{pedestrain_sam2_forward.2} parent=63 // pred_check
          %p833 = pneg %p184
        $region66: #{pedestrain_sam2_forward.2} parent=63 // pred_check_branch
          %835 = sbr.rel (%p833) target = $region68
        $region67: #{pedestrain_sam2_forward.2} parent=63 // pred_region
          %p836 = scmp.lt.s32.totalorder %s25, 1
          %s837 = scalar_select %p836, %s25, 1
          %s838 = smul.addr %s837, 2
          %s839 = smul.addr %s838, 4
          %s840 = scalar_lea.vmem %s6, %s839
        $region68: #{pedestrain_sam2_forward.2} parent=63 // pred_fallthru
          _
        // Predicated region
        $region69: #{pedestrain_sam2_forward.2} parent=63 // pred_check
          %p841 = pneg %p210
        $region70: #{pedestrain_sam2_forward.2} parent=63 // pred_check_branch
          %843 = sbr.rel (%p841) target = $region72
        $region71: #{pedestrain_sam2_forward.2} parent=63 // pred_region
          %s844 = sand.u32 %s195, 1
          %s845 = scalar_lea.sflag [#allocation3], %s844
          %s846 = sand.u32 %s195, 1
          %s847 = scalar_lea.vmem [#allocation2], %s846
          %848 = dma.done %s845, 16
        $region72: #{pedestrain_sam2_forward.2} parent=63 // pred_fallthru
          _
        // Predicated region
        $region73: #{pedestrain_sam2_forward.2} parent=63 // pred_check
          %p849 = pneg %p236
        $region74: #{pedestrain_sam2_forward.2} parent=63 // pred_check_branch
          %851 = sbr.rel (%p849) target = $region76
        $region75: #{pedestrain_sam2_forward.2} parent=63 // pred_region
          %p852 = scmp.lt.s32.totalorder %s25, 1
          %s853 = scalar_select %p852, %s25, 1
          %s854 = smul.addr %s853, 2
          %s855 = scalar_lea.vmem %s8, %s854
        $region76: #{pedestrain_sam2_forward.2} parent=63 // pred_fallthru
          _
        // Predicated region
        $region77: #{pedestrain_sam2_forward.2} parent=63 // pred_check
          %p856 = pneg %p262
        $region78: #{pedestrain_sam2_forward.2} parent=63 // pred_check_branch
          %858 = sbr.rel (%p856) target = $region80
        $region79: #{pedestrain_sam2_forward.2} parent=63 // pred_region
          %p859 = scmp.lt.s32.totalorder %s25, 1
          %s860 = scalar_select %p859, %s25, 1
          %s861 = scalar_lea.vmem %s9, %s860
        $region80: #{pedestrain_sam2_forward.2} parent=63 // pred_fallthru
          _
      $region64: #{pedestrain_sam2_forward.2} parent=5 // pred_fallthru
        _
    $region6: #{pedestrain_sam2_forward.2} parent=1 // loop_footer
      %s23 = sadd.s32 1, %s19
    $region7: #{pedestrain_sam2_forward.2} parent=1 // loop_footer_branch
      %18 = sbr.rel target = $region3
    $region8: #{pedestrain_sam2_forward.2} parent=1 // loop_exit
      _
    %862 = vsyncpa [#allocation3], 1
    %s863 = scalar_lea.sflag [#allocation3], 1
    %864 = vsyncpa %s863, 1

// kernel: pedestrain_sam2_forward.3
$region0: #{pedestrain_sam2_forward.3}
  #allocation0 [shape = 'u32[]', space=smem, size = 0x4, offset = 0x4, fixed_abs, tag = 'smem constant byte address 0x4 - core index']
  #allocation1 [shape = 'u32[144,128]{1,0:T(1,128)}', space=vmem, size = 0x12000, scoped, tag = 'internal scratch']
  #allocation2 [shape = 'f32[1,1]{1,0:T(1,128)S(1)}', space=vmem, size = 0x200, scoped, tag = 'scoped memory for pedestrain_sam2_forward.3']
  %s0 = inlined_call_operand.vmem [shape: bf16[2,27,256], index: 0, kind: input, shape index: {}]
  %s1 = inlined_call_operand.vmem [shape: bf16[8,27], index: 1, kind: input, shape index: {}]
  %s2 = inlined_call_operand.vmem [shape: f32[8,1], index: 2, kind: input, shape index: {}]
  %s3 = inlined_call_operand.vmem [shape: f32[8,1], index: 3, kind: input, shape index: {}]
  %s4 = inlined_call_operand.<no memory space> [shape: f32[1,1], index: 4, kind: input, shape index: {}]
  %s5 = inlined_call_operand.vmem [shape: f32[2,1,1], index: 5, kind: output, shape index: {}]
  %s6 = sld [smem:[#allocation0]]
  $region53: #{pedestrain_sam2_forward.3} parent=0
    _
  %s8 = ssub.s32 1, %s6
  %s9 = scalar_select 0, %s8, %s6
  %v10 = vstv %s4
  %11 = vst [vmem:[#allocation2] sm:$0x1] %v10
  loop: start=0, step=1, limit=4
  $region2: #{pedestrain_sam2_forward.3} parent=0 // loop_pre_header
    _
  $region3: #{pedestrain_sam2_forward.3} parent=0 // loop_header
    %s13 = sphi 0, %s17
    %p14 = scmp.ge.s32.totalorder %s13, 4
    %s23 = sphi 0, %s25
    %s26 = sphi 0, %s23
    %s27 = sphi 0, %s26
    %s43 = sphi 0, %s27
    %s47 = sphi 0, %s47
    %s49 = sphi 0, %s47
    %s50 = sphi 0, %s49
    %s64 = sphi 0, %s50
    %s68 = sphi 0, %s68
    %s70 = sphi 0, %s68
    %s71 = sphi 0, %s70
    %s85 = sphi 0, %s71
    %s89 = sphi 0, %s89
    %s91 = sphi 0, %s89
    %s92 = sphi 0, %s91
    %s106 = sphi 0, %s92
    %s110 = sphi 0, %s110
    %s112 = sphi 0, %s110
    %s113 = sphi 0, %s112
    %s127 = sphi 0, %s113
    %s133 = sphi 0, %s135
    %s136 = sphi 0, %s133
    %s137 = sphi 0, %s136
    %s153 = sphi 0, %s137
  $region4: #{pedestrain_sam2_forward.3} parent=0 // loop_header_branch
    %16 = sbr.rel (%p14) target = $region8
  $region5: #{pedestrain_sam2_forward.3} parent=0 // loop_body
    %s18 = ssub.s32 %s13, 1
    %s19 = ssub.s32 %s13, 2
    %s20 = sadd.s32 %s13, 1
    %s21 = ssub.s32 %s13, %s20
    %p22 = scmp.eq.s32.totalorder %s21, 0
    %s24 = sadd.s32 %s23, 1
    %s25 = scalar_select %p22, %s23, %s24
    %p28 = pneg %p22
    %p29 = scmp.eq.s32.totalorder %s13, 1
    %p30 = por %p28, %p29
    %p31 = scmp.ne.s32.totalorder %s23, %s26
    %p32 = scmp.eq.s32.totalorder %s13, 0
    %p33 = por %p31, %p32
    %p34 = scmp.ne.s32.totalorder %s23, %s26
    %p35 = scmp.eq.s32.totalorder %s18, 1
    %p36 = por %p34, %p35
    %p37 = scmp.ne.s32.totalorder %s26, %s27
    %p38 = scmp.eq.s32.totalorder %s18, 0
    %p39 = por %p37, %p38
    %p40 = scmp.ne.s32.totalorder %s26, %s27
    %p41 = scmp.eq.s32.totalorder %s19, 1
    %p42 = por %p40, %p41
    %p44 = scmp.ne.s32.totalorder %s27, %s43
    %p45 = scmp.eq.s32.totalorder %s19, 0
    %p46 = por %p44, %p45
    %s48 = sadd.s32 %s47, 1
    %p51 = scmp.eq.s32.totalorder %s13, 1
    %p52 = scmp.ne.s32.totalorder %s47, %s49
    %p53 = scmp.eq.s32.totalorder %s13, 0
    %p54 = por %p52, %p53
    %p55 = scmp.ne.s32.totalorder %s47, %s49
    %p56 = scmp.eq.s32.totalorder %s18, 1
    %p57 = por %p55, %p56
    %p58 = scmp.ne.s32.totalorder %s49, %s50
    %p59 = scmp.eq.s32.totalorder %s18, 0
    %p60 = por %p58, %p59
    %p61 = scmp.ne.s32.totalorder %s49, %s50
    %p62 = scmp.eq.s32.totalorder %s19, 1
    %p63 = por %p61, %p62
    %p65 = scmp.ne.s32.totalorder %s50, %s64
    %p66 = scmp.eq.s32.totalorder %s19, 0
    %p67 = por %p65, %p66
    %s69 = sadd.s32 %s68, 1
    %p72 = scmp.eq.s32.totalorder %s13, 1
    %p73 = scmp.ne.s32.totalorder %s68, %s70
    %p74 = scmp.eq.s32.totalorder %s13, 0
    %p75 = por %p73, %p74
    %p76 = scmp.ne.s32.totalorder %s68, %s70
    %p77 = scmp.eq.s32.totalorder %s18, 1
    %p78 = por %p76, %p77
    %p79 = scmp.ne.s32.totalorder %s70, %s71
    %p80 = scmp.eq.s32.totalorder %s18, 0
    %p81 = por %p79, %p80
    %p82 = scmp.ne.s32.totalorder %s70, %s71
    %p83 = scmp.eq.s32.totalorder %s19, 1
    %p84 = por %p82, %p83
    %p86 = scmp.ne.s32.totalorder %s71, %s85
    %p87 = scmp.eq.s32.totalorder %s19, 0
    %p88 = por %p86, %p87
    %s90 = sadd.s32 %s89, 1
    %p93 = scmp.eq.s32.totalorder %s13, 1
    %p94 = scmp.ne.s32.totalorder %s89, %s91
    %p95 = scmp.eq.s32.totalorder %s13, 0
    %p96 = por %p94, %p95
    %p97 = scmp.ne.s32.totalorder %s89, %s91
    %p98 = scmp.eq.s32.totalorder %s18, 1
    %p99 = por %p97, %p98
    %p100 = scmp.ne.s32.totalorder %s91, %s92
    %p101 = scmp.eq.s32.totalorder %s18, 0
    %p102 = por %p100, %p101
    %p103 = scmp.ne.s32.totalorder %s91, %s92
    %p104 = scmp.eq.s32.totalorder %s19, 1
    %p105 = por %p103, %p104
    %p107 = scmp.ne.s32.totalorder %s92, %s106
    %p108 = scmp.eq.s32.totalorder %s19, 0
    %p109 = por %p107, %p108
    %s111 = sadd.s32 %s110, 1
    %p114 = scmp.eq.s32.totalorder %s13, 1
    %p115 = scmp.ne.s32.totalorder %s110, %s112
    %p116 = scmp.eq.s32.totalorder %s13, 0
    %p117 = por %p115, %p116
    %p118 = scmp.ne.s32.totalorder %s110, %s112
    %p119 = scmp.eq.s32.totalorder %s18, 1
    %p120 = por %p118, %p119
    %p121 = scmp.ne.s32.totalorder %s112, %s113
    %p122 = scmp.eq.s32.totalorder %s18, 0
    %p123 = por %p121, %p122
    %p124 = scmp.ne.s32.totalorder %s112, %s113
    %p125 = scmp.eq.s32.totalorder %s19, 1
    %p126 = por %p124, %p125
    %p128 = scmp.ne.s32.totalorder %s113, %s127
    %p129 = scmp.eq.s32.totalorder %s19, 0
    %p130 = por %p128, %p129
    %s131 = ssub.s32 %s13, %s20
    %p132 = scmp.eq.s32.totalorder %s131, 0
    %s134 = sadd.s32 %s133, 1
    %s135 = scalar_select %p132, %s133, %s134
    %p138 = pneg %p132
    %p139 = scmp.eq.s32.totalorder %s13, 1
    %p140 = por %p138, %p139
    %p141 = scmp.ne.s32.totalorder %s133, %s136
    %p142 = scmp.eq.s32.totalorder %s13, 0
    %p143 = por %p141, %p142
    %p144 = scmp.ne.s32.totalorder %s133, %s136
    %p145 = scmp.eq.s32.totalorder %s18, 1
    %p146 = por %p144, %p145
    %p147 = scmp.ne.s32.totalorder %s136, %s137
    %p148 = scmp.eq.s32.totalorder %s18, 0
    %p149 = por %p147, %p148
    %p150 = scmp.ne.s32.totalorder %s136, %s137
    %p151 = scmp.eq.s32.totalorder %s19, 1
    %p152 = por %p150, %p151
    %p154 = scmp.ne.s32.totalorder %s137, %s153
    %p155 = scmp.eq.s32.totalorder %s19, 0
    %p156 = por %p154, %p155
    %p157 = scmp.le.s32.totalorder 1, %s13
    %p158 = scmp.lt.s32.totalorder %s13, 3
    %p159 = pnand %p157, %p158
    %p160 = pneg %p159
    // Predicated region
    $region9: #{pedestrain_sam2_forward.3} parent=5 // pred_check
      _
    $region10: #{pedestrain_sam2_forward.3} parent=5 // pred_check_branch
      %162 = sbr.rel (%p159) target = $region12
    $region11: #{pedestrain_sam2_forward.3} parent=5 // pred_region
      %s163 = ssub.s32 %s13, 1
      // Predicated region
      $region13: #{pedestrain_sam2_forward.3} parent=11 // pred_check
        %p164 = pneg %p60
      $region14: #{pedestrain_sam2_forward.3} parent=11 // pred_check_branch
        %166 = sbr.rel (%p164) target = $region16
      $region15: #{pedestrain_sam2_forward.3} parent=11 // pred_region
        _
      $region16: #{pedestrain_sam2_forward.3} parent=11 // pred_fallthru
        _
      // Predicated region
      $region17: #{pedestrain_sam2_forward.3} parent=11 // pred_check
        %p167 = pneg %p81
      $region18: #{pedestrain_sam2_forward.3} parent=11 // pred_check_branch
        %169 = sbr.rel (%p167) target = $region20
      $region19: #{pedestrain_sam2_forward.3} parent=11 // pred_region
        _
      $region20: #{pedestrain_sam2_forward.3} parent=11 // pred_fallthru
        _
      // Predicated region
      $region21: #{pedestrain_sam2_forward.3} parent=11 // pred_check
        %p170 = pneg %p102
      $region22: #{pedestrain_sam2_forward.3} parent=11 // pred_check_branch
        %172 = sbr.rel (%p170) target = $region24
      $region23: #{pedestrain_sam2_forward.3} parent=11 // pred_region
        _
      $region24: #{pedestrain_sam2_forward.3} parent=11 // pred_fallthru
        _
      // Predicated region
      $region25: #{pedestrain_sam2_forward.3} parent=11 // pred_check
        %p173 = pneg %p123
      $region26: #{pedestrain_sam2_forward.3} parent=11 // pred_check_branch
        %175 = sbr.rel (%p173) target = $region28
      $region27: #{pedestrain_sam2_forward.3} parent=11 // pred_region
        _
      $region28: #{pedestrain_sam2_forward.3} parent=11 // pred_fallthru
        _
    $region12: #{pedestrain_sam2_forward.3} parent=5 // pred_fallthru
      _
    %p176 = scmp.lt.s32.totalorder %s13, 2
    // Predicated region
    $region29: #{pedestrain_sam2_forward.3} parent=5 // pred_check
      %p177 = pneg %p176
    $region30: #{pedestrain_sam2_forward.3} parent=5 // pred_check_branch
      %179 = sbr.rel (%p177) target = $region32
    $region31: #{pedestrain_sam2_forward.3} parent=5 // pred_region
      // Predicated region
      $region33: #{pedestrain_sam2_forward.3} parent=31 // pred_check
        %p180 = pneg %p33
      $region34: #{pedestrain_sam2_forward.3} parent=31 // pred_check_branch
        %182 = sbr.rel (%p180) target = $region36
      $region35: #{pedestrain_sam2_forward.3} parent=31 // pred_region
        %p183 = scmp.lt.s32.totalorder %s13, 1
        %s184 = scalar_select %p183, %s13, 1
        %s185 = smul.addr %s184, 8
        %s186 = smul.addr %s185, 4
        %s187 = scalar_lea.vmem %s0, %s186
      $region36: #{pedestrain_sam2_forward.3} parent=31 // pred_fallthru
        _
    $region32: #{pedestrain_sam2_forward.3} parent=5 // pred_fallthru
      _
    %p188 = scmp.le.s32.totalorder 1, %s13
    %p189 = scmp.lt.s32.totalorder %s13, 3
    %p190 = pnand %p188, %p189
    %p191 = pneg %p190
    // Predicated region
    $region37: #{pedestrain_sam2_forward.3} parent=5 // pred_check
      _
    $region38: #{pedestrain_sam2_forward.3} parent=5 // pred_check_branch
      %193 = sbr.rel (%p190) target = $region40
    $region39: #{pedestrain_sam2_forward.3} parent=5 // pred_region
      %s194 = ssub.s32 %s13, 1
      %p195 = scmp.lt.s32.totalorder %s18, 1
      %s196 = scalar_select %p195, %s18, 1
      %s197 = smul.addr %s196, 8
      %s198 = smul.addr %s197, 4
      %s199 = scalar_lea.vmem %s0, %s198
      %p200 = pneg %p39
      %p201 = pneg %p36
      %p202 = pneg %p60
      %p203 = pneg %p57
      %p204 = pneg %p81
      %p205 = pneg %p78
      %p206 = pneg %p102
      %p207 = pneg %p99
      %p208 = pneg %p123
      %p209 = pneg %p120
      %p210 = pneg %p149
      %p211 = pneg %p146
      %p212 = scmp.lt.s32.totalorder %s18, 1
      %s213 = scalar_select %p212, %s18, 1
      %s214 = scalar_lea.vmem %s5, %s213
      %p215 = scmp.lt.s32.totalorder %s18, 1
      %s216 = scalar_select %p215, %s18, 1
      %s217 = smul.addr %s216, 8
      %s218 = smul.addr %s217, 4
      %s219 = scalar_lea.vmem %s0, %s218
      %p220 = scmp.lt.s32.totalorder %s18, 1
      %s221 = scalar_select %p220, %s18, 1
      %s222 = scalar_lea.vmem %s5, %s221
      %v224 = vld [vmem:[%s1] sm:$0xf]
      %v225 = vld [vmem:[%s219] sm:$0xff]
      %v226 = vld [vmem:[%s219 + $0x8] sm:$0xff]
      %v227 = vld [vmem:[%s219 + $0x10] sm:$0xff]
      %v228 = vld [vmem:[%s219 + $0x18] sm:$0x33]
      %v229 = vld [vmem:[%s2] sm:$0xff]
      %231 = vset.pattern.permute.xlu0 0
      %232 = vperm.xlu0 %231, %v229
      %v233 = vpop.permute.xlu0 %232
      %v239 = vunpack.c.l.b16 %v225
      %v240 = vunpack.c.h.b16 %v225
      %v241 = vunpack.c.l.b16 %v226
      %v242 = vunpack.c.h.b16 %v226
      %v243 = vunpack.c.l.b16 %v227
      %v244 = vunpack.c.h.b16 %v227
      %v245 = vunpack.c.l.b16 %v228
      %v246 = vunpack.c.h.b16 %v228
      %v247 = vpack.c.b16 %v241, %v239
      %v248 = vpack.c.b16 %v242, %v240
      %v249 = vpack.c.b16 %v245, %v243
      %v250 = vpack.c.b16 %v246, %v244
      %vm253 = vcmask 220160
      %v255 = vsel %vm253, %v224, 0
      %vm257 = vcmask 1044480
      %vm258 = vcmask 1045504
      %v259 = vsel %vm257, 4294967295, 65535
      %v260 = vsel %vm258, %v259, 0
      %v262 = vand.u32 %v249, %v260
      %v265 = vand.u32 %v250, %v260
      %267 = vmatprep.subr.bf16.mxu0 %v248
      %268 = vmatpush1.bf16.msra.mxu0 %v247
      %269 = vmatprep.subr.bf16.mxu0 %v265
      %270 = vmatpush1.bf16.msra.mxu0 %v262
      %271 = vmatprep.subr.bf16.mxu0 0
      %272 = vmatpush1.bf16.msra.mxu0 0
      %273 = vmatprep.subr.bf16.mxu0 0
      %274 = vmatpush1.bf16.msra.mxu0 0
      %275 = vmatprep.subr.bf16.mxu0 0
      %276 = vmatpush1.bf16.msra.mxu0 0
      %277 = vmatprep.subr.bf16.mxu0 0
      %278 = vmatpush1.bf16.msra.mxu0 0
      %279 = vmatprep.subr.bf16.mxu0 0
      %280 = vmatpush1.bf16.msra.mxu0 0
      %281 = vmatprep.subr.bf16.mxu0 0
      %282 = vmatpush1.bf16.msra.mxu0 0
      %283 = vmatprep.subr.bf16.mxu0 0
      %284 = vmatpush1.bf16.msra.mxu0 0
      %285 = vmatprep.subr.bf16.mxu0 0
      %286 = vmatpush1.bf16.msra.mxu0 0
      %287 = vmatprep.subr.bf16.mxu0 0
      %288 = vmatpush1.bf16.msra.mxu0 0
      %289 = vmatprep.subr.bf16.mxu0 0
      %290 = vmatpush1.bf16.msra.mxu0 0
      %291 = vmatprep.subr.bf16.mxu0 0
      %292 = vmatpush1.bf16.msra.mxu0 0
      %293 = vmatprep.subr.bf16.mxu0 0
      %294 = vmatpush1.bf16.msra.mxu0 0
      %295 = vmatprep.subr.bf16.mxu0 0
      %296 = vmatpush1.bf16.msra.mxu0 0
      %297 = vmatprep.subr.bf16.mxu0 0
      %298 = vmatpush1.bf16.msra.mxu0 0
      %299 = vmatprep.mubr.bf16.mxu0 0
      %300 = vmatmul.mubr.bf16.gmra.mrb[0].mxu0 %v255
      %v301 = vpop.f32.mrb[0].mxu0
      %v302 = vadd.f32 %v233, %v301
      %v303 = vpop.f32.mrb[0].mxu0
      %v304 = vadd.f32 %v233, %v303
      %v305 = vpop.f32.mrb[0].mxu0
      %v306 = vpop.f32.mrb[0].mxu0
      %307 = vdwg.mxu0
      %v308 = vmax.f32 %v302, 0.0
      %v309 = vmax.f32 %v304, 0.0
      %v310 = vadd.f32 %v308, %v309
      %311 = vadd.xlane.f32.xlu0 %v310
      %v312 = vpop.xlane.xlu0 %311
      %v313 = vrcp.pop 256.0
      %v314 = vmul.f32 %v312, %v313
      %v315 = vld [vmem:[%s3] sm:$0xff]
      %v316 = vmul.f32 %v315, %v314
      %vm317 = vcmask 7168
      %v318 = vsel %vm317, %v316, 0.0
      %v319 = vrot.slane %v318, 4
      %v320 = vadd.f32 %v318, %v319
      %v321 = vrot.slane %v320, 2
      %v322 = vadd.f32 %v320, %v321
      %v323 = vrot.slane %v322, 1
      %v324 = vadd.f32 %v322, %v323
      %v325 = vld [vmem:[#allocation2] sm:$0x1]
      %v326 = vadd.f32 %v324, %v325
      %vm327 = vcmask 0
      %328 = vst.msk [vmem:[%s222] sm:$0x1] %vm327, %v326
      %p329 = scmp.lt.s32.totalorder %s18, 1
      %s330 = scalar_select %p329, %s18, 1
      %s331 = scalar_lea.vmem %s5, %s330
      // Predicated region
      $region41: #{pedestrain_sam2_forward.3} parent=39 // pred_check
        %p332 = pneg %p146
      $region42: #{pedestrain_sam2_forward.3} parent=39 // pred_check_branch
        %334 = sbr.rel (%p332) target = $region44
      $region43: #{pedestrain_sam2_forward.3} parent=39 // pred_region
        _
      $region44: #{pedestrain_sam2_forward.3} parent=39 // pred_fallthru
        _
    $region40: #{pedestrain_sam2_forward.3} parent=5 // pred_fallthru
      _
    %p335 = scmp.le.s32.totalorder 2, %s13
    // Predicated region
    $region45: #{pedestrain_sam2_forward.3} parent=5 // pred_check
      %p336 = pneg %p335
    $region46: #{pedestrain_sam2_forward.3} parent=5 // pred_check_branch
      %338 = sbr.rel (%p336) target = $region48
    $region47: #{pedestrain_sam2_forward.3} parent=5 // pred_region
      %s339 = ssub.s32 %s13, 2
      // Predicated region
      $region49: #{pedestrain_sam2_forward.3} parent=47 // pred_check
        %p340 = pneg %p152
      $region50: #{pedestrain_sam2_forward.3} parent=47 // pred_check_branch
        %342 = sbr.rel (%p340) target = $region52
      $region51: #{pedestrain_sam2_forward.3} parent=47 // pred_region
        %p343 = scmp.lt.s32.totalorder %s19, 1
        %s344 = scalar_select %p343, %s19, 1
        %s345 = scalar_lea.vmem %s5, %s344
      $region52: #{pedestrain_sam2_forward.3} parent=47 // pred_fallthru
        _
    $region48: #{pedestrain_sam2_forward.3} parent=5 // pred_fallthru
      _
  $region6: #{pedestrain_sam2_forward.3} parent=0 // loop_footer
    %s17 = sadd.s32 1, %s13
  $region7: #{pedestrain_sam2_forward.3} parent=0 // loop_footer_branch
    %12 = sbr.rel target = $region3
  $region8: #{pedestrain_sam2_forward.3} parent=0 // loop_exit
    _

</llo_original>
